<compile_context>
chip_gen: v6e
topology: v6e:2x2x1
jax: 0.10.0
libtpu: 0.0.40
codegen_flags: <defaults>
</compile_context>

<pallas_src>
import jax
import jax.numpy as jnp
from jax.experimental import pallas as pl
from jax.experimental.pallas import tpu as pltpu

ALPHA = 1.6732632423543772   # SELU constants (PyTorch)
SCALE = 1.0507009873554805
BN_EPS = 1e-5


def _selu(x):
    return SCALE * jnp.where(x > 0, x, ALPHA * (jnp.exp(jnp.minimum(x, 0.0)) - 1.0))


# ----------------------------- Pallas kernel ------------------------------- #

def _fused_kernel(x_ref, len_ref, avg_ref,
                  wavg_ref, bavg_ref,
                  wi_ref, bi_ref, wh_ref, bh_ref,
                  w1_ref, b1_ref, w2_ref, b2_ref,
                  out_ref, gx_scr):
    # x_ref:   (B*T, I) f32, rows ordered b-major (row = b*T + t)
    # gx_scr:  (B*T, 3H) f32 VMEM scratch for the hoisted input projection
    B = len_ref.shape[0]
    T = x_ref.shape[0] // B
    H = wh_ref.shape[0]

    # h0 = avg_fc(avg)
    h = (jnp.dot(avg_ref[...], wavg_ref[...], preferred_element_type=jnp.float32)
         + bavg_ref[...])                                          # (B, H)

    # Hoisted input projection for all timesteps (independent of h).
    gx_scr[...] = (jnp.dot(x_ref[...], wi_ref[...],
                           preferred_element_type=jnp.float32) + bi_ref[...])

    lens = len_ref[...]                                            # (B, 1) int32
    wh = wh_ref[...]
    bh = bh_ref[...]

    # Fully unrolled recurrence; h is a loop-carried value (stays in vregs).
    for t in range(T):
        # rows b*T + t for b = 0..B-1  -> (B, 3H), batch order preserved
        gx = gx_scr[pl.ds(t, B, stride=T), :]
        gh = jnp.dot(h, wh, preferred_element_type=jnp.float32) + bh
        a = gx + gh
        r = jax.nn.sigmoid(a[:, 0:H])
        z = jax.nn.sigmoid(a[:, H:2 * H])
        n = jnp.tanh(gx[:, 2 * H:3 * H] + r * gh[:, 2 * H:3 * H])
        h_new = (1.0 - z) * n + z * h
        # packed-sequence semantics: freeze rows whose sequence has ended
        h = jnp.where(t < lens, h_new, h)

    # Fused head: [Dropout(eval=identity) -> Linear(BN folded) -> SELU] x 2
    y = jnp.dot(h, w1_ref[...], preferred_element_type=jnp.float32) + b1_ref[...]
    y = _selu(y)
    y = jnp.dot(y, w2_ref[...], preferred_element_type=jnp.float32) + b2_ref[...]
    y = _selu(y)
    out_ref[...] = y


# ------------------------------- wrapper ----------------------------------- #

@jax.jit
def point_seq_hazard_forward(inp, lengths, avg, p):
    """inp: (B, T, I) batch_first, lengths: (B,), avg: (B, I-1) -> (B,)"""
    B, T, I = inp.shape
    H = p["wh_cat"].shape[0]

    x2d = inp.astype(jnp.float32).reshape(B * T, I)     # free view, b-major rows
    len_col = lengths.astype(jnp.int32).reshape(B, 1)

    # Fold eval-mode BatchNorm affine into the head linears (weight-sized math).
    s1 = p["g1"] * jax.lax.rsqrt(p["v1"] + BN_EPS)
    w1 = p["w1_T"] * s1
    b1 = (p["b1"] - p["m1"]) * s1 + p["be1"]
    s2 = p["g2"] * jax.lax.rsqrt(p["v2"] + BN_EPS)
    w2 = p["w2_T"] * s2
    b2 = (p["b2"] - p["m2"]) * s2 + p["be2"]

    out = pl.pallas_call(
        _fused_kernel,
        out_shape=jax.ShapeDtypeStruct((B, 1), jnp.float32),
        scratch_shapes=[pltpu.VMEM((B * T, 3 * H), jnp.float32)],
    )(x2d, len_col, avg.astype(jnp.float32),
      p["wavg_T"], p["bavg"],
      p["wi_cat"], p["bi_cat"], p["wh_cat"], p["bh_cat"],
      w1, b1, w2, b2)

    return out[:, 0]      # .squeeze(-1)


# ----------------------- parameters & pure-JAX reference -------------------- #

def init_params(key, I, H, F1):
    ks = jax.random.split(key, 18)

    def u(k, shape, fan):
        b = 1.0 / float(fan) ** 0.5
        return jax.random.uniform(k, shape, jnp.float32, -b, b)

    p = {}
    # GRU, gate-fused layouts: column blocks ordered [r | z | n].
    p["wi_cat"] = jnp.concatenate([u(ks[0], (H, I), H).T,
                                   u(ks[1], (H, I), H).T,
                                   u(ks[2], (H, I), H).T], axis=1)    # (I, 3H)
    p["wh_cat"] = jnp.concatenate([u(ks[3], (H, H), H).T,
                                   u(ks[4], (H, H), H).T,
                                   u(ks[5], (H, H), H).T], axis=1)    # (H, 3H)
    p["bi_cat"] = jnp.concatenate([u(ks[6], (1, H), H),
                                   u(ks[7], (1, H), H),
                                   u(ks[8], (1, H), H)], axis=1)      # b_ir|b_iz|b_in
    p["bh_cat"] = jnp.concatenate([u(ks[9], (1, H), H),
                                   u(ks[10], (1, H), H),
                                   u(ks[11], (1, H), H)], axis=1)     # b_hr|b_hz|b_hn
    # avg_fc: Linear(I-1, H)
    p["wavg_T"] = u(ks[12], (H, I - 1), I - 1).T
    p["bavg"] = u(ks[13], (1, H), I - 1)
    # head layer 1: Linear(H, F1) + BN(F1)
    p["w1_T"] = u(ks[14], (F1, H), H).T
    p["b1"] = u(ks[15], (1, F1), H)
    p["g1"] = jnp.ones((1, F1), jnp.float32)
    p["be1"] = jnp.zeros((1, F1), jnp.float32)
    p["m1"] = jnp.zeros((1, F1), jnp.float32)
    p["v1"] = jnp.ones((1, F1), jnp.float32)
    # head layer 2: Linear(F1, 1) + BN(1)
    p["w2_T"] = u(ks[16], (1, F1), F1).T
    p["b2"] = u(ks[17], (1, 1), F1)
    p["g2"] = jnp.ones((1, 1), jnp.float32)
    p["be2"] = jnp.zeros((1, 1), jnp.float32)
    p["m2"] = jnp.zeros((1, 1), jnp.float32)
    p["v2"] = jnp.ones((1, 1), jnp.float32)
    return p


def reference_forward(inp, lengths, avg, p):
    B, T, I = inp.shape
    H = p["wh_cat"].shape[0]
    h = avg @ p["wavg_T"] + p["bavg"]
    for t in range(T):
        x_t = inp[:, t, :]
        gx = x_t @ p["wi_cat"] + p["bi_cat"]
        gh = h @ p["wh_cat"] + p["bh_cat"]
        r = jax.nn.sigmoid(gx[:, :H] + gh[:, :H])
        z = jax.nn.sigmoid(gx[:, H:2 * H] + gh[:, H:2 * H])
        n = jnp.tanh(gx[:, 2 * H:] + r * gh[:, 2 * H:])
        h_new = (1.0 - z) * n + z * h
        h = jnp.where((t < lengths).reshape(B, 1), h_new, h)
    y = h @ p["w1_T"] + p["b1"]
    y = (y - p["m1"]) * jax.lax.rsqrt(p["v1"] + BN_EPS) * p["g1"] + p["be1"]
    y = _selu(y)
    y = y @ p["w2_T"] + p["b2"]
    y = (y - p["m2"]) * jax.lax.rsqrt(p["v2"] + BN_EPS) * p["g2"] + p["be2"]
    y = _selu(y)
    return y[:, 0]


# ---------------------------------- main ----------------------------------- #

if __name__ == "__main__":
    # batch, seq, input_size, hidden_size_point_seq, fc_point_seq=[16, 1]
    B, T, I, H, F1 = 8, 8, 6, 32, 16
    key = jax.random.PRNGKey(0)
    kx, ka, kp = jax.random.split(key, 3)

    inp = jax.random.normal(kx, (B, T, I), jnp.float32)        # batch_first input
    avg = jax.random.normal(ka, (B, I - 1), jnp.float32)       # avg features
    lengths = jnp.array([8, 3, 5, 1, 7, 2, 8, 4], dtype=jnp.int32)

    params = init_params(kp, I, H, F1)

    out = point_seq_hazard_forward(inp, lengths, avg, params)
    out = jax.block_until_ready(out)

    ref = reference_forward(inp, lengths, avg, params)
    assert out.shape == (B,), out.shape
    assert jnp.allclose(out, ref, atol=1e-2, rtol=1e-2), (out, ref)
    print("KERNEL_OK")
</pallas_src>

<mosaic_0001>
module attributes {stable_mosaic.version = 11 : i64} {
  func.func @_fused_kernel(%arg0: memref<64x6xf32, #tpu.memory_space<vmem>>, %arg1: memref<8x1xi32, #tpu.memory_space<vmem>>, %arg2: memref<8x5xf32, #tpu.memory_space<vmem>>, %arg3: memref<5x32xf32, #tpu.memory_space<vmem>>, %arg4: memref<1x32xf32, #tpu.memory_space<vmem>>, %arg5: memref<6x96xf32, #tpu.memory_space<vmem>>, %arg6: memref<1x96xf32, #tpu.memory_space<vmem>>, %arg7: memref<32x96xf32, #tpu.memory_space<vmem>>, %arg8: memref<1x96xf32, #tpu.memory_space<vmem>>, %arg9: memref<32x16xf32, #tpu.memory_space<vmem>>, %arg10: memref<1x16xf32, #tpu.memory_space<vmem>>, %arg11: memref<16x1xf32, #tpu.memory_space<vmem>>, %arg12: memref<1x1xf32, #tpu.memory_space<vmem>>, %arg13: memref<8x1xf32, #tpu.memory_space<vmem>>, %arg14: memref<64x96xf32, #tpu.memory_space<vmem>>) attributes {dimension_semantics = [], scalar_prefetch = 0 : i64, scratch_operands = 1 : i64, tpu.core_type = #tpu.core_type<tc>} {
    %c0 = arith.constant 0 : index
    %c0_0 = arith.constant 0 : index
    %0 = vector.load %arg2[%c0, %c0_0] : memref<8x5xf32, #tpu.memory_space<vmem>>, vector<8x5xf32>
    %c0_1 = arith.constant 0 : index
    %c0_2 = arith.constant 0 : index
    %1 = vector.load %arg3[%c0_1, %c0_2] : memref<5x32xf32, #tpu.memory_space<vmem>>, vector<5x32xf32>
    %cst = arith.constant dense<0.000000e+00> : vector<8x32xf32>
    %2 = tpu.matmul %0, %1, %cst {dimension_numbers = #tpu.dot_dimension_numbers<[1], [0], [0], [1], [0, 0, 1, 1], [], []>} : vector<8x5xf32>, vector<5x32xf32>, vector<8x32xf32> -> vector<8x32xf32>
    %c0_3 = arith.constant 0 : index
    %c0_4 = arith.constant 0 : index
    %3 = vector.load %arg4[%c0_3, %c0_4] : memref<1x32xf32, #tpu.memory_space<vmem>>, vector<1x32xf32>
    %4 = vector.broadcast %3 : vector<1x32xf32> to vector<8x32xf32>
    %5 = arith.addf %2, %4 : vector<8x32xf32>
    %c0_5 = arith.constant 0 : index
    %c0_6 = arith.constant 0 : index
    %6 = vector.load %arg0[%c0_5, %c0_6] : memref<64x6xf32, #tpu.memory_space<vmem>>, vector<64x6xf32>
    %c0_7 = arith.constant 0 : index
    %c0_8 = arith.constant 0 : index
    %7 = vector.load %arg5[%c0_7, %c0_8] : memref<6x96xf32, #tpu.memory_space<vmem>>, vector<6x96xf32>
    %cst_9 = arith.constant dense<0.000000e+00> : vector<64x96xf32>
    %8 = tpu.matmul %6, %7, %cst_9 {dimension_numbers = #tpu.dot_dimension_numbers<[1], [0], [0], [1], [0, 0, 1, 1], [], []>} : vector<64x6xf32>, vector<6x96xf32>, vector<64x96xf32> -> vector<64x96xf32>
    %c0_10 = arith.constant 0 : index
    %c0_11 = arith.constant 0 : index
    %9 = vector.load %arg6[%c0_10, %c0_11] : memref<1x96xf32, #tpu.memory_space<vmem>>, vector<1x96xf32>
    %10 = vector.broadcast %9 : vector<1x96xf32> to vector<64x96xf32>
    %11 = arith.addf %8, %10 : vector<64x96xf32>
    %c0_12 = arith.constant 0 : index
    %c0_13 = arith.constant 0 : index
    %12 = vector.load %arg14[%c0_12, %c0_13] : memref<64x96xf32, #tpu.memory_space<vmem>>, vector<64x96xf32>
    tpu.vector_store %arg14[%c0_12, %c0_13], %11 {strides = array<i32>} : memref<64x96xf32, #tpu.memory_space<vmem>>, vector<64x96xf32>,
    %c0_14 = arith.constant 0 : index
    %c0_15 = arith.constant 0 : index
    %13 = vector.load %arg1[%c0_14, %c0_15] : memref<8x1xi32, #tpu.memory_space<vmem>>, vector<8x1xi32>
    %c0_16 = arith.constant 0 : index
    %c0_17 = arith.constant 0 : index
    %14 = vector.load %arg7[%c0_16, %c0_17] : memref<32x96xf32, #tpu.memory_space<vmem>>, vector<32x96xf32>
    %c0_18 = arith.constant 0 : index
    %c0_19 = arith.constant 0 : index
    %15 = vector.load %arg8[%c0_18, %c0_19] : memref<1x96xf32, #tpu.memory_space<vmem>>, vector<1x96xf32>
    %c0_20 = arith.constant 0 : index
    %c0_21 = arith.constant 0 : index
    %16 = tpu.strided_load %arg14[%c0_20, %c0_21] {strides = array<i32: 8, 1>} : memref<64x96xf32, #tpu.memory_space<vmem>>, vector<8x96xf32>
    %cst_22 = arith.constant dense<0.000000e+00> : vector<8x96xf32>
    %17 = tpu.matmul %5, %14, %cst_22 {dimension_numbers = #tpu.dot_dimension_numbers<[1], [0], [0], [1], [0, 0, 1, 1], [], []>} : vector<8x32xf32>, vector<32x96xf32>, vector<8x96xf32> -> vector<8x96xf32>
    %18 = vector.broadcast %15 : vector<1x96xf32> to vector<8x96xf32>
    %19 = arith.addf %17, %18 : vector<8x96xf32>
    %20 = arith.addf %16, %19 : vector<8x96xf32>
    %21 = vector.extract_strided_slice %20 {offsets = [0, 0], sizes = [8, 32], strides = [1, 1]} : vector<8x96xf32> to vector<8x32xf32>
    %22 = arith.negf %21 : vector<8x32xf32>
    %23 = math.exp %22 : vector<8x32xf32>
    %cst_23 = arith.constant 1.000000e+00 : f32
    %24 = vector.broadcast %cst_23 : f32 to vector<8x32xf32>
    %25 = arith.addf %24, %23 : vector<8x32xf32>
    %26 = arith.divf %24, %25 : vector<8x32xf32>
    %27 = vector.extract_strided_slice %20 {offsets = [0, 32], sizes = [8, 32], strides = [1, 1]} : vector<8x96xf32> to vector<8x32xf32>
    %28 = arith.negf %27 : vector<8x32xf32>
    %29 = math.exp %28 : vector<8x32xf32>
    %cst_24 = arith.constant 1.000000e+00 : f32
    %30 = vector.broadcast %cst_24 : f32 to vector<8x32xf32>
    %31 = arith.addf %30, %29 : vector<8x32xf32>
    %32 = arith.divf %30, %31 : vector<8x32xf32>
    %33 = vector.extract_strided_slice %16 {offsets = [0, 64], sizes = [8, 32], strides = [1, 1]} : vector<8x96xf32> to vector<8x32xf32>
    %34 = vector.extract_strided_slice %19 {offsets = [0, 64], sizes = [8, 32], strides = [1, 1]} : vector<8x96xf32> to vector<8x32xf32>
    %35 = arith.mulf %26, %34 : vector<8x32xf32>
    %36 = arith.addf %33, %35 : vector<8x32xf32>
    %37 = math.tanh %36 : vector<8x32xf32>
    %cst_25 = arith.constant 1.000000e+00 : f32
    %38 = vector.broadcast %cst_25 : f32 to vector<8x32xf32>
    %39 = arith.subf %38, %32 : vector<8x32xf32>
    %40 = arith.mulf %39, %37 : vector<8x32xf32>
    %41 = arith.mulf %32, %5 : vector<8x32xf32>
    %42 = arith.addf %40, %41 : vector<8x32xf32>
    %c0_i32 = arith.constant 0 : i32
    %43 = vector.broadcast %c0_i32 : i32 to vector<8x1xi32>
    %44 = arith.cmpi sgt, %13, %43 : vector<8x1xi32>
    %45 = vector.shape_cast %44 : vector<8x1xi1> to vector<8x1xi1>
    %46 = vector.broadcast %45 : vector<8x1xi1> to vector<8x32xi1>
    %47 = arith.select %46, %42, %5 : vector<8x32xi1>, vector<8x32xf32>
    %c1 = arith.constant 1 : index
    %c0_26 = arith.constant 0 : index
    %48 = tpu.strided_load %arg14[%c1, %c0_26] {strides = array<i32: 8, 1>} : memref<64x96xf32, #tpu.memory_space<vmem>>, vector<8x96xf32>
    %cst_27 = arith.constant dense<0.000000e+00> : vector<8x96xf32>
    %49 = tpu.matmul %47, %14, %cst_27 {dimension_numbers = #tpu.dot_dimension_numbers<[1], [0], [0], [1], [0, 0, 1, 1], [], []>} : vector<8x32xf32>, vector<32x96xf32>, vector<8x96xf32> -> vector<8x96xf32>
    %50 = vector.broadcast %15 : vector<1x96xf32> to vector<8x96xf32>
    %51 = arith.addf %49, %50 : vector<8x96xf32>
    %52 = arith.addf %48, %51 : vector<8x96xf32>
    %53 = vector.extract_strided_slice %52 {offsets = [0, 0], sizes = [8, 32], strides = [1, 1]} : vector<8x96xf32> to vector<8x32xf32>
    %54 = arith.negf %53 : vector<8x32xf32>
    %55 = math.exp %54 : vector<8x32xf32>
    %cst_28 = arith.constant 1.000000e+00 : f32
    %56 = vector.broadcast %cst_28 : f32 to vector<8x32xf32>
    %57 = arith.addf %56, %55 : vector<8x32xf32>
    %58 = arith.divf %56, %57 : vector<8x32xf32>
    %59 = vector.extract_strided_slice %52 {offsets = [0, 32], sizes = [8, 32], strides = [1, 1]} : vector<8x96xf32> to vector<8x32xf32>
    %60 = arith.negf %59 : vector<8x32xf32>
    %61 = math.exp %60 : vector<8x32xf32>
    %cst_29 = arith.constant 1.000000e+00 : f32
    %62 = vector.broadcast %cst_29 : f32 to vector<8x32xf32>
    %63 = arith.addf %62, %61 : vector<8x32xf32>
    %64 = arith.divf %62, %63 : vector<8x32xf32>
    %65 = vector.extract_strided_slice %48 {offsets = [0, 64], sizes = [8, 32], strides = [1, 1]} : vector<8x96xf32> to vector<8x32xf32>
    %66 = vector.extract_strided_slice %51 {offsets = [0, 64], sizes = [8, 32], strides = [1, 1]} : vector<8x96xf32> to vector<8x32xf32>
    %67 = arith.mulf %58, %66 : vector<8x32xf32>
    %68 = arith.addf %65, %67 : vector<8x32xf32>
    %69 = math.tanh %68 : vector<8x32xf32>
    %cst_30 = arith.constant 1.000000e+00 : f32
    %70 = vector.broadcast %cst_30 : f32 to vector<8x32xf32>
    %71 = arith.subf %70, %64 : vector<8x32xf32>
    %72 = arith.mulf %71, %69 : vector<8x32xf32>
    %73 = arith.mulf %64, %47 : vector<8x32xf32>
    %74 = arith.addf %72, %73 : vector<8x32xf32>
    %c1_i32 = arith.constant 1 : i32
    %75 = vector.broadcast %c1_i32 : i32 to vector<8x1xi32>
    %76 = arith.cmpi sgt, %13, %75 : vector<8x1xi32>
    %77 = vector.shape_cast %76 : vector<8x1xi1> to vector<8x1xi1>
    %78 = vector.broadcast %77 : vector<8x1xi1> to vector<8x32xi1>
    %79 = arith.select %78, %74, %47 : vector<8x32xi1>, vector<8x32xf32>
    %c2 = arith.constant 2 : index
    %c0_31 = arith.constant 0 : index
    %80 = tpu.strided_load %arg14[%c2, %c0_31] {strides = array<i32: 8, 1>} : memref<64x96xf32, #tpu.memory_space<vmem>>, vector<8x96xf32>
    %cst_32 = arith.constant dense<0.000000e+00> : vector<8x96xf32>
    %81 = tpu.matmul %79, %14, %cst_32 {dimension_numbers = #tpu.dot_dimension_numbers<[1], [0], [0], [1], [0, 0, 1, 1], [], []>} : vector<8x32xf32>, vector<32x96xf32>, vector<8x96xf32> -> vector<8x96xf32>
    %82 = vector.broadcast %15 : vector<1x96xf32> to vector<8x96xf32>
    %83 = arith.addf %81, %82 : vector<8x96xf32>
    %84 = arith.addf %80, %83 : vector<8x96xf32>
    %85 = vector.extract_strided_slice %84 {offsets = [0, 0], sizes = [8, 32], strides = [1, 1]} : vector<8x96xf32> to vector<8x32xf32>
    %86 = arith.negf %85 : vector<8x32xf32>
    %87 = math.exp %86 : vector<8x32xf32>
    %cst_33 = arith.constant 1.000000e+00 : f32
    %88 = vector.broadcast %cst_33 : f32 to vector<8x32xf32>
    %89 = arith.addf %88, %87 : vector<8x32xf32>
    %90 = arith.divf %88, %89 : vector<8x32xf32>
    %91 = vector.extract_strided_slice %84 {offsets = [0, 32], sizes = [8, 32], strides = [1, 1]} : vector<8x96xf32> to vector<8x32xf32>
    %92 = arith.negf %91 : vector<8x32xf32>
    %93 = math.exp %92 : vector<8x32xf32>
    %cst_34 = arith.constant 1.000000e+00 : f32
    %94 = vector.broadcast %cst_34 : f32 to vector<8x32xf32>
    %95 = arith.addf %94, %93 : vector<8x32xf32>
    %96 = arith.divf %94, %95 : vector<8x32xf32>
    %97 = vector.extract_strided_slice %80 {offsets = [0, 64], sizes = [8, 32], strides = [1, 1]} : vector<8x96xf32> to vector<8x32xf32>
    %98 = vector.extract_strided_slice %83 {offsets = [0, 64], sizes = [8, 32], strides = [1, 1]} : vector<8x96xf32> to vector<8x32xf32>
    %99 = arith.mulf %90, %98 : vector<8x32xf32>
    %100 = arith.addf %97, %99 : vector<8x32xf32>
    %101 = math.tanh %100 : vector<8x32xf32>
    %cst_35 = arith.constant 1.000000e+00 : f32
    %102 = vector.broadcast %cst_35 : f32 to vector<8x32xf32>
    %103 = arith.subf %102, %96 : vector<8x32xf32>
    %104 = arith.mulf %103, %101 : vector<8x32xf32>
    %105 = arith.mulf %96, %79 : vector<8x32xf32>
    %106 = arith.addf %104, %105 : vector<8x32xf32>
    %c2_i32 = arith.constant 2 : i32
    %107 = vector.broadcast %c2_i32 : i32 to vector<8x1xi32>
    %108 = arith.cmpi sgt, %13, %107 : vector<8x1xi32>
    %109 = vector.shape_cast %108 : vector<8x1xi1> to vector<8x1xi1>
    %110 = vector.broadcast %109 : vector<8x1xi1> to vector<8x32xi1>
    %111 = arith.select %110, %106, %79 : vector<8x32xi1>, vector<8x32xf32>
    %c3 = arith.constant 3 : index
    %c0_36 = arith.constant 0 : index
    %112 = tpu.strided_load %arg14[%c3, %c0_36] {strides = array<i32: 8, 1>} : memref<64x96xf32, #tpu.memory_space<vmem>>, vector<8x96xf32>
    %cst_37 = arith.constant dense<0.000000e+00> : vector<8x96xf32>
    %113 = tpu.matmul %111, %14, %cst_37 {dimension_numbers = #tpu.dot_dimension_numbers<[1], [0], [0], [1], [0, 0, 1, 1], [], []>} : vector<8x32xf32>, vector<32x96xf32>, vector<8x96xf32> -> vector<8x96xf32>
    %114 = vector.broadcast %15 : vector<1x96xf32> to vector<8x96xf32>
    %115 = arith.addf %113, %114 : vector<8x96xf32>
    %116 = arith.addf %112, %115 : vector<8x96xf32>
    %117 = vector.extract_strided_slice %116 {offsets = [0, 0], sizes = [8, 32], strides = [1, 1]} : vector<8x96xf32> to vector<8x32xf32>
    %118 = arith.negf %117 : vector<8x32xf32>
    %119 = math.exp %118 : vector<8x32xf32>
    %cst_38 = arith.constant 1.000000e+00 : f32
    %120 = vector.broadcast %cst_38 : f32 to vector<8x32xf32>
    %121 = arith.addf %120, %119 : vector<8x32xf32>
    %122 = arith.divf %120, %121 : vector<8x32xf32>
    %123 = vector.extract_strided_slice %116 {offsets = [0, 32], sizes = [8, 32], strides = [1, 1]} : vector<8x96xf32> to vector<8x32xf32>
    %124 = arith.negf %123 : vector<8x32xf32>
    %125 = math.exp %124 : vector<8x32xf32>
    %cst_39 = arith.constant 1.000000e+00 : f32
    %126 = vector.broadcast %cst_39 : f32 to vector<8x32xf32>
    %127 = arith.addf %126, %125 : vector<8x32xf32>
    %128 = arith.divf %126, %127 : vector<8x32xf32>
    %129 = vector.extract_strided_slice %112 {offsets = [0, 64], sizes = [8, 32], strides = [1, 1]} : vector<8x96xf32> to vector<8x32xf32>
    %130 = vector.extract_strided_slice %115 {offsets = [0, 64], sizes = [8, 32], strides = [1, 1]} : vector<8x96xf32> to vector<8x32xf32>
    %131 = arith.mulf %122, %130 : vector<8x32xf32>
    %132 = arith.addf %129, %131 : vector<8x32xf32>
    %133 = math.tanh %132 : vector<8x32xf32>
    %cst_40 = arith.constant 1.000000e+00 : f32
    %134 = vector.broadcast %cst_40 : f32 to vector<8x32xf32>
    %135 = arith.subf %134, %128 : vector<8x32xf32>
    %136 = arith.mulf %135, %133 : vector<8x32xf32>
    %137 = arith.mulf %128, %111 : vector<8x32xf32>
    %138 = arith.addf %136, %137 : vector<8x32xf32>
    %c3_i32 = arith.constant 3 : i32
    %139 = vector.broadcast %c3_i32 : i32 to vector<8x1xi32>
    %140 = arith.cmpi sgt, %13, %139 : vector<8x1xi32>
    %141 = vector.shape_cast %140 : vector<8x1xi1> to vector<8x1xi1>
    %142 = vector.broadcast %141 : vector<8x1xi1> to vector<8x32xi1>
    %143 = arith.select %142, %138, %111 : vector<8x32xi1>, vector<8x32xf32>
    %c4 = arith.constant 4 : index
    %c0_41 = arith.constant 0 : index
    %144 = tpu.strided_load %arg14[%c4, %c0_41] {strides = array<i32: 8, 1>} : memref<64x96xf32, #tpu.memory_space<vmem>>, vector<8x96xf32>
    %cst_42 = arith.constant dense<0.000000e+00> : vector<8x96xf32>
    %145 = tpu.matmul %143, %14, %cst_42 {dimension_numbers = #tpu.dot_dimension_numbers<[1], [0], [0], [1], [0, 0, 1, 1], [], []>} : vector<8x32xf32>, vector<32x96xf32>, vector<8x96xf32> -> vector<8x96xf32>
    %146 = vector.broadcast %15 : vector<1x96xf32> to vector<8x96xf32>
    %147 = arith.addf %145, %146 : vector<8x96xf32>
    %148 = arith.addf %144, %147 : vector<8x96xf32>
    %149 = vector.extract_strided_slice %148 {offsets = [0, 0], sizes = [8, 32], strides = [1, 1]} : vector<8x96xf32> to vector<8x32xf32>
    %150 = arith.negf %149 : vector<8x32xf32>
    %151 = math.exp %150 : vector<8x32xf32>
    %cst_43 = arith.constant 1.000000e+00 : f32
    %152 = vector.broadcast %cst_43 : f32 to vector<8x32xf32>
    %153 = arith.addf %152, %151 : vector<8x32xf32>
    %154 = arith.divf %152, %153 : vector<8x32xf32>
    %155 = vector.extract_strided_slice %148 {offsets = [0, 32], sizes = [8, 32], strides = [1, 1]} : vector<8x96xf32> to vector<8x32xf32>
    %156 = arith.negf %155 : vector<8x32xf32>
    %157 = math.exp %156 : vector<8x32xf32>
    %cst_44 = arith.constant 1.000000e+00 : f32
    %158 = vector.broadcast %cst_44 : f32 to vector<8x32xf32>
    %159 = arith.addf %158, %157 : vector<8x32xf32>
    %160 = arith.divf %158, %159 : vector<8x32xf32>
    %161 = vector.extract_strided_slice %144 {offsets = [0, 64], sizes = [8, 32], strides = [1, 1]} : vector<8x96xf32> to vector<8x32xf32>
    %162 = vector.extract_strided_slice %147 {offsets = [0, 64], sizes = [8, 32], strides = [1, 1]} : vector<8x96xf32> to vector<8x32xf32>
    %163 = arith.mulf %154, %162 : vector<8x32xf32>
    %164 = arith.addf %161, %163 : vector<8x32xf32>
    %165 = math.tanh %164 : vector<8x32xf32>
    %cst_45 = arith.constant 1.000000e+00 : f32
    %166 = vector.broadcast %cst_45 : f32 to vector<8x32xf32>
    %167 = arith.subf %166, %160 : vector<8x32xf32>
    %168 = arith.mulf %167, %165 : vector<8x32xf32>
    %169 = arith.mulf %160, %143 : vector<8x32xf32>
    %170 = arith.addf %168, %169 : vector<8x32xf32>
    %c4_i32 = arith.constant 4 : i32
    %171 = vector.broadcast %c4_i32 : i32 to vector<8x1xi32>
    %172 = arith.cmpi sgt, %13, %171 : vector<8x1xi32>
    %173 = vector.shape_cast %172 : vector<8x1xi1> to vector<8x1xi1>
    %174 = vector.broadcast %173 : vector<8x1xi1> to vector<8x32xi1>
    %175 = arith.select %174, %170, %143 : vector<8x32xi1>, vector<8x32xf32>
    %c5 = arith.constant 5 : index
    %c0_46 = arith.constant 0 : index
    %176 = tpu.strided_load %arg14[%c5, %c0_46] {strides = array<i32: 8, 1>} : memref<64x96xf32, #tpu.memory_space<vmem>>, vector<8x96xf32>
    %cst_47 = arith.constant dense<0.000000e+00> : vector<8x96xf32>
    %177 = tpu.matmul %175, %14, %cst_47 {dimension_numbers = #tpu.dot_dimension_numbers<[1], [0], [0], [1], [0, 0, 1, 1], [], []>} : vector<8x32xf32>, vector<32x96xf32>, vector<8x96xf32> -> vector<8x96xf32>
    %178 = vector.broadcast %15 : vector<1x96xf32> to vector<8x96xf32>
    %179 = arith.addf %177, %178 : vector<8x96xf32>
    %180 = arith.addf %176, %179 : vector<8x96xf32>
    %181 = vector.extract_strided_slice %180 {offsets = [0, 0], sizes = [8, 32], strides = [1, 1]} : vector<8x96xf32> to vector<8x32xf32>
    %182 = arith.negf %181 : vector<8x32xf32>
    %183 = math.exp %182 : vector<8x32xf32>
    %cst_48 = arith.constant 1.000000e+00 : f32
    %184 = vector.broadcast %cst_48 : f32 to vector<8x32xf32>
    %185 = arith.addf %184, %183 : vector<8x32xf32>
    %186 = arith.divf %184, %185 : vector<8x32xf32>
    %187 = vector.extract_strided_slice %180 {offsets = [0, 32], sizes = [8, 32], strides = [1, 1]} : vector<8x96xf32> to vector<8x32xf32>
    %188 = arith.negf %187 : vector<8x32xf32>
    %189 = math.exp %188 : vector<8x32xf32>
    %cst_49 = arith.constant 1.000000e+00 : f32
    %190 = vector.broadcast %cst_49 : f32 to vector<8x32xf32>
    %191 = arith.addf %190, %189 : vector<8x32xf32>
    %192 = arith.divf %190, %191 : vector<8x32xf32>
    %193 = vector.extract_strided_slice %176 {offsets = [0, 64], sizes = [8, 32], strides = [1, 1]} : vector<8x96xf32> to vector<8x32xf32>
    %194 = vector.extract_strided_slice %179 {offsets = [0, 64], sizes = [8, 32], strides = [1, 1]} : vector<8x96xf32> to vector<8x32xf32>
    %195 = arith.mulf %186, %194 : vector<8x32xf32>
    %196 = arith.addf %193, %195 : vector<8x32xf32>
    %197 = math.tanh %196 : vector<8x32xf32>
    %cst_50 = arith.constant 1.000000e+00 : f32
    %198 = vector.broadcast %cst_50 : f32 to vector<8x32xf32>
    %199 = arith.subf %198, %192 : vector<8x32xf32>
    %200 = arith.mulf %199, %197 : vector<8x32xf32>
    %201 = arith.mulf %192, %175 : vector<8x32xf32>
    %202 = arith.addf %200, %201 : vector<8x32xf32>
    %c5_i32 = arith.constant 5 : i32
    %203 = vector.broadcast %c5_i32 : i32 to vector<8x1xi32>
    %204 = arith.cmpi sgt, %13, %203 : vector<8x1xi32>
    %205 = vector.shape_cast %204 : vector<8x1xi1> to vector<8x1xi1>
    %206 = vector.broadcast %205 : vector<8x1xi1> to vector<8x32xi1>
    %207 = arith.select %206, %202, %175 : vector<8x32xi1>, vector<8x32xf32>
    %c6 = arith.constant 6 : index
    %c0_51 = arith.constant 0 : index
    %208 = tpu.strided_load %arg14[%c6, %c0_51] {strides = array<i32: 8, 1>} : memref<64x96xf32, #tpu.memory_space<vmem>>, vector<8x96xf32>
    %cst_52 = arith.constant dense<0.000000e+00> : vector<8x96xf32>
    %209 = tpu.matmul %207, %14, %cst_52 {dimension_numbers = #tpu.dot_dimension_numbers<[1], [0], [0], [1], [0, 0, 1, 1], [], []>} : vector<8x32xf32>, vector<32x96xf32>, vector<8x96xf32> -> vector<8x96xf32>
    %210 = vector.broadcast %15 : vector<1x96xf32> to vector<8x96xf32>
    %211 = arith.addf %209, %210 : vector<8x96xf32>
    %212 = arith.addf %208, %211 : vector<8x96xf32>
    %213 = vector.extract_strided_slice %212 {offsets = [0, 0], sizes = [8, 32], strides = [1, 1]} : vector<8x96xf32> to vector<8x32xf32>
    %214 = arith.negf %213 : vector<8x32xf32>
    %215 = math.exp %214 : vector<8x32xf32>
    %cst_53 = arith.constant 1.000000e+00 : f32
    %216 = vector.broadcast %cst_53 : f32 to vector<8x32xf32>
    %217 = arith.addf %216, %215 : vector<8x32xf32>
    %218 = arith.divf %216, %217 : vector<8x32xf32>
    %219 = vector.extract_strided_slice %212 {offsets = [0, 32], sizes = [8, 32], strides = [1, 1]} : vector<8x96xf32> to vector<8x32xf32>
    %220 = arith.negf %219 : vector<8x32xf32>
    %221 = math.exp %220 : vector<8x32xf32>
    %cst_54 = arith.constant 1.000000e+00 : f32
    %222 = vector.broadcast %cst_54 : f32 to vector<8x32xf32>
    %223 = arith.addf %222, %221 : vector<8x32xf32>
    %224 = arith.divf %222, %223 : vector<8x32xf32>
    %225 = vector.extract_strided_slice %208 {offsets = [0, 64], sizes = [8, 32], strides = [1, 1]} : vector<8x96xf32> to vector<8x32xf32>
    %226 = vector.extract_strided_slice %211 {offsets = [0, 64], sizes = [8, 32], strides = [1, 1]} : vector<8x96xf32> to vector<8x32xf32>
    %227 = arith.mulf %218, %226 : vector<8x32xf32>
    %228 = arith.addf %225, %227 : vector<8x32xf32>
    %229 = math.tanh %228 : vector<8x32xf32>
    %cst_55 = arith.constant 1.000000e+00 : f32
    %230 = vector.broadcast %cst_55 : f32 to vector<8x32xf32>
    %231 = arith.subf %230, %224 : vector<8x32xf32>
    %232 = arith.mulf %231, %229 : vector<8x32xf32>
    %233 = arith.mulf %224, %207 : vector<8x32xf32>
    %234 = arith.addf %232, %233 : vector<8x32xf32>
    %c6_i32 = arith.constant 6 : i32
    %235 = vector.broadcast %c6_i32 : i32 to vector<8x1xi32>
    %236 = arith.cmpi sgt, %13, %235 : vector<8x1xi32>
    %237 = vector.shape_cast %236 : vector<8x1xi1> to vector<8x1xi1>
    %238 = vector.broadcast %237 : vector<8x1xi1> to vector<8x32xi1>
    %239 = arith.select %238, %234, %207 : vector<8x32xi1>, vector<8x32xf32>
    %c7 = arith.constant 7 : index
    %c0_56 = arith.constant 0 : index
    %240 = tpu.strided_load %arg14[%c7, %c0_56] {strides = array<i32: 8, 1>} : memref<64x96xf32, #tpu.memory_space<vmem>>, vector<8x96xf32>
    %cst_57 = arith.constant dense<0.000000e+00> : vector<8x96xf32>
    %241 = tpu.matmul %239, %14, %cst_57 {dimension_numbers = #tpu.dot_dimension_numbers<[1], [0], [0], [1], [0, 0, 1, 1], [], []>} : vector<8x32xf32>, vector<32x96xf32>, vector<8x96xf32> -> vector<8x96xf32>
    %242 = vector.broadcast %15 : vector<1x96xf32> to vector<8x96xf32>
    %243 = arith.addf %241, %242 : vector<8x96xf32>
    %244 = arith.addf %240, %243 : vector<8x96xf32>
    %245 = vector.extract_strided_slice %244 {offsets = [0, 0], sizes = [8, 32], strides = [1, 1]} : vector<8x96xf32> to vector<8x32xf32>
    %246 = arith.negf %245 : vector<8x32xf32>
    %247 = math.exp %246 : vector<8x32xf32>
    %cst_58 = arith.constant 1.000000e+00 : f32
    %248 = vector.broadcast %cst_58 : f32 to vector<8x32xf32>
    %249 = arith.addf %248, %247 : vector<8x32xf32>
    %250 = arith.divf %248, %249 : vector<8x32xf32>
    %251 = vector.extract_strided_slice %244 {offsets = [0, 32], sizes = [8, 32], strides = [1, 1]} : vector<8x96xf32> to vector<8x32xf32>
    %252 = arith.negf %251 : vector<8x32xf32>
    %253 = math.exp %252 : vector<8x32xf32>
    %cst_59 = arith.constant 1.000000e+00 : f32
    %254 = vector.broadcast %cst_59 : f32 to vector<8x32xf32>
    %255 = arith.addf %254, %253 : vector<8x32xf32>
    %256 = arith.divf %254, %255 : vector<8x32xf32>
    %257 = vector.extract_strided_slice %240 {offsets = [0, 64], sizes = [8, 32], strides = [1, 1]} : vector<8x96xf32> to vector<8x32xf32>
    %258 = vector.extract_strided_slice %243 {offsets = [0, 64], sizes = [8, 32], strides = [1, 1]} : vector<8x96xf32> to vector<8x32xf32>
    %259 = arith.mulf %250, %258 : vector<8x32xf32>
    %260 = arith.addf %257, %259 : vector<8x32xf32>
    %261 = math.tanh %260 : vector<8x32xf32>
    %cst_60 = arith.constant 1.000000e+00 : f32
    %262 = vector.broadcast %cst_60 : f32 to vector<8x32xf32>
    %263 = arith.subf %262, %256 : vector<8x32xf32>
    %264 = arith.mulf %263, %261 : vector<8x32xf32>
    %265 = arith.mulf %256, %239 : vector<8x32xf32>
    %266 = arith.addf %264, %265 : vector<8x32xf32>
    %c7_i32 = arith.constant 7 : i32
    %267 = vector.broadcast %c7_i32 : i32 to vector<8x1xi32>
    %268 = arith.cmpi sgt, %13, %267 : vector<8x1xi32>
    %269 = vector.shape_cast %268 : vector<8x1xi1> to vector<8x1xi1>
    %270 = vector.broadcast %269 : vector<8x1xi1> to vector<8x32xi1>
    %271 = arith.select %270, %266, %239 : vector<8x32xi1>, vector<8x32xf32>
    %c0_61 = arith.constant 0 : index
    %c0_62 = arith.constant 0 : index
    %272 = vector.load %arg9[%c0_61, %c0_62] : memref<32x16xf32, #tpu.memory_space<vmem>>, vector<32x16xf32>
    %cst_63 = arith.constant dense<0.000000e+00> : vector<8x16xf32>
    %273 = tpu.matmul %271, %272, %cst_63 {dimension_numbers = #tpu.dot_dimension_numbers<[1], [0], [0], [1], [0, 0, 1, 1], [], []>} : vector<8x32xf32>, vector<32x16xf32>, vector<8x16xf32> -> vector<8x16xf32>
    %c0_64 = arith.constant 0 : index
    %c0_65 = arith.constant 0 : index
    %274 = vector.load %arg10[%c0_64, %c0_65] : memref<1x16xf32, #tpu.memory_space<vmem>>, vector<1x16xf32>
    %275 = vector.broadcast %274 : vector<1x16xf32> to vector<8x16xf32>
    %276 = arith.addf %273, %275 : vector<8x16xf32>
    %cst_66 = arith.constant 0.000000e+00 : f32
    %277 = vector.broadcast %cst_66 : f32 to vector<8x16xf32>
    %278 = arith.cmpf ogt, %276, %277 : vector<8x16xf32>
    %cst_67 = arith.constant 0.000000e+00 : f32
    %279 = vector.broadcast %cst_67 : f32 to vector<8x16xf32>
    %280 = arith.minimumf %276, %279 : vector<8x16xf32>
    %281 = math.exp %280 : vector<8x16xf32>
    %cst_68 = arith.constant 1.000000e+00 : f32
    %282 = vector.broadcast %cst_68 : f32 to vector<8x16xf32>
    %283 = arith.subf %281, %282 : vector<8x16xf32>
    %cst_69 = arith.constant 1.67326319 : f32
    %284 = vector.broadcast %cst_69 : f32 to vector<8x16xf32>
    %285 = arith.mulf %284, %283 : vector<8x16xf32>
    %286 = arith.select %278, %276, %285 : vector<8x16xi1>, vector<8x16xf32>
    %cst_70 = arith.constant 1.05070102 : f32
    %287 = vector.broadcast %cst_70 : f32 to vector<8x16xf32>
    %288 = arith.mulf %287, %286 : vector<8x16xf32>
    %c0_71 = arith.constant 0 : index
    %c0_72 = arith.constant 0 : index
    %289 = vector.load %arg11[%c0_71, %c0_72] : memref<16x1xf32, #tpu.memory_space<vmem>>, vector<16x1xf32>
    %cst_73 = arith.constant dense<0.000000e+00> : vector<8x1xf32>
    %290 = tpu.matmul %288, %289, %cst_73 {dimension_numbers = #tpu.dot_dimension_numbers<[1], [0], [0], [1], [0, 0, 1, 1], [], []>} : vector<8x16xf32>, vector<16x1xf32>, vector<8x1xf32> -> vector<8x1xf32>
    %c0_74 = arith.constant 0 : index
    %c0_75 = arith.constant 0 : index
    %291 = vector.load %arg12[%c0_74, %c0_75] : memref<1x1xf32, #tpu.memory_space<vmem>>, vector<1x1xf32>
    %292 = vector.broadcast %291 : vector<1x1xf32> to vector<8x1xf32>
    %293 = arith.addf %290, %292 : vector<8x1xf32>
    %cst_76 = arith.constant 0.000000e+00 : f32
    %294 = vector.broadcast %cst_76 : f32 to vector<8x1xf32>
    %295 = arith.cmpf ogt, %293, %294 : vector<8x1xf32>
    %cst_77 = arith.constant 0.000000e+00 : f32
    %296 = vector.broadcast %cst_77 : f32 to vector<8x1xf32>
    %297 = arith.minimumf %293, %296 : vector<8x1xf32>
    %298 = math.exp %297 : vector<8x1xf32>
    %cst_78 = arith.constant 1.000000e+00 : f32
    %299 = vector.broadcast %cst_78 : f32 to vector<8x1xf32>
    %300 = arith.subf %298, %299 : vector<8x1xf32>
    %cst_79 = arith.constant 1.67326319 : f32
    %301 = vector.broadcast %cst_79 : f32 to vector<8x1xf32>
    %302 = arith.mulf %301, %300 : vector<8x1xf32>
    %303 = arith.select %295, %293, %302 : vector<8x1xi1>, vector<8x1xf32>
    %cst_80 = arith.constant 1.05070102 : f32
    %304 = vector.broadcast %cst_80 : f32 to vector<8x1xf32>
    %305 = arith.mulf %304, %303 : vector<8x1xf32>
    %c0_81 = arith.constant 0 : index
    %c0_82 = arith.constant 0 : index
    %306 = vector.load %arg13[%c0_81, %c0_82] : memref<8x1xf32, #tpu.memory_space<vmem>>, vector<8x1xf32>
    tpu.vector_store %arg13[%c0_81, %c0_82], %305 {strides = array<i32>} : memref<8x1xf32, #tpu.memory_space<vmem>>, vector<8x1xf32>,
    return
  }
}

</mosaic_0001>

<llo_original>
// kernel: point_seq_hazard_forward.1
$region0: #{point_seq_hazard_forward.1}
  #allocation0 [shape = 'u32[]', space=smem, size = 0x4, offset = 0x4, fixed_abs, tag = 'smem constant byte address 0x4 - core index']
  #allocation1 [shape = 'u32[144,128]{1,0:T(1,128)}', space=vmem, size = 0x12000, scoped, tag = 'internal scratch']
  #allocation2 [shape = 'f32[64,96]{1,0:T(8,128)}', space=vmem, size = 0x8000, scoped, tag = 'scratch operand']
  #allocation3 [shape = 'f32[1,1]{1,0:T(1,128)S(1)}', space=vmem, size = 0x200, scoped, tag = 'scoped memory for point_seq_hazard_forward.1']
  %s0 = inlined_call_operand.vmem [shape: f32[64,6], index: 0, kind: input, shape index: {}]
  %s1 = inlined_call_operand.vmem [shape: s32[8,1], index: 1, kind: input, shape index: {}]
  %s2 = inlined_call_operand.vmem [shape: f32[8,5], index: 2, kind: input, shape index: {}]
  %s3 = inlined_call_operand.vmem [shape: f32[5,32], index: 3, kind: input, shape index: {}]
  %s4 = inlined_call_operand.vmem [shape: f32[1,32], index: 4, kind: input, shape index: {}]
  %s5 = inlined_call_operand.vmem [shape: f32[6,96], index: 5, kind: input, shape index: {}]
  %s6 = inlined_call_operand.vmem [shape: f32[1,96], index: 6, kind: input, shape index: {}]
  %s7 = inlined_call_operand.vmem [shape: f32[32,96], index: 7, kind: input, shape index: {}]
  %s8 = inlined_call_operand.vmem [shape: f32[1,96], index: 8, kind: input, shape index: {}]
  %s9 = inlined_call_operand.vmem [shape: f32[32,16], index: 9, kind: input, shape index: {}]
  %s10 = inlined_call_operand.vmem [shape: f32[1,16], index: 10, kind: input, shape index: {}]
  %s11 = inlined_call_operand.vmem [shape: f32[16,1], index: 11, kind: input, shape index: {}]
  %s12 = inlined_call_operand.<no memory space> [shape: f32[1,1], index: 12, kind: input, shape index: {}]
  %s13 = inlined_call_operand.vmem [shape: f32[8,1], index: 13, kind: output, shape index: {}]
  %s14 = sld [smem:[#allocation0]]
  $region62: #{point_seq_hazard_forward.1} parent=0
    _
  %s16 = ssub.s32 1, %s14
  %s17 = scalar_select 0, %s16, %s14
  %v18 = vstv %s12
  %19 = vst [vmem:[#allocation3] sm:$0x1] %v18
  // Predicated region
  $region2: #{point_seq_hazard_forward.1} parent=0 // pred_check
    _
  $region3: #{point_seq_hazard_forward.1} parent=0 // pred_check_branch
    %21 = sbr.rel (0) target = $region5
  $region4: #{point_seq_hazard_forward.1} parent=0 // pred_region
    _
  $region5: #{point_seq_hazard_forward.1} parent=0 // pred_fallthru
    _
  // Predicated region
  $region6: #{point_seq_hazard_forward.1} parent=0 // pred_check
    _
  $region7: #{point_seq_hazard_forward.1} parent=0 // pred_check_branch
    %23 = sbr.rel (0) target = $region9
  $region8: #{point_seq_hazard_forward.1} parent=0 // pred_region
    _
  $region9: #{point_seq_hazard_forward.1} parent=0 // pred_fallthru
    _
  // Predicated region
  $region10: #{point_seq_hazard_forward.1} parent=0 // pred_check
    _
  $region11: #{point_seq_hazard_forward.1} parent=0 // pred_check_branch
    %25 = sbr.rel (0) target = $region13
  $region12: #{point_seq_hazard_forward.1} parent=0 // pred_region
    _
  $region13: #{point_seq_hazard_forward.1} parent=0 // pred_fallthru
    _
  // Predicated region
  $region14: #{point_seq_hazard_forward.1} parent=0 // pred_check
    _
  $region15: #{point_seq_hazard_forward.1} parent=0 // pred_check_branch
    %27 = sbr.rel (0) target = $region17
  $region16: #{point_seq_hazard_forward.1} parent=0 // pred_region
    _
  $region17: #{point_seq_hazard_forward.1} parent=0 // pred_fallthru
    _
  // Predicated region
  $region18: #{point_seq_hazard_forward.1} parent=0 // pred_check
    _
  $region19: #{point_seq_hazard_forward.1} parent=0 // pred_check_branch
    %29 = sbr.rel (0) target = $region21
  $region20: #{point_seq_hazard_forward.1} parent=0 // pred_region
    _
  $region21: #{point_seq_hazard_forward.1} parent=0 // pred_fallthru
    _
  // Predicated region
  $region22: #{point_seq_hazard_forward.1} parent=0 // pred_check
    _
  $region23: #{point_seq_hazard_forward.1} parent=0 // pred_check_branch
    %31 = sbr.rel (0) target = $region25
  $region24: #{point_seq_hazard_forward.1} parent=0 // pred_region
    _
  $region25: #{point_seq_hazard_forward.1} parent=0 // pred_fallthru
    _
  // Predicated region
  $region26: #{point_seq_hazard_forward.1} parent=0 // pred_check
    _
  $region27: #{point_seq_hazard_forward.1} parent=0 // pred_check_branch
    %33 = sbr.rel (0) target = $region29
  $region28: #{point_seq_hazard_forward.1} parent=0 // pred_region
    _
  $region29: #{point_seq_hazard_forward.1} parent=0 // pred_fallthru
    _
  // Predicated region
  $region30: #{point_seq_hazard_forward.1} parent=0 // pred_check
    _
  $region31: #{point_seq_hazard_forward.1} parent=0 // pred_check_branch
    %35 = sbr.rel (0) target = $region33
  $region32: #{point_seq_hazard_forward.1} parent=0 // pred_region
    _
  $region33: #{point_seq_hazard_forward.1} parent=0 // pred_fallthru
    _
  // Predicated region
  $region34: #{point_seq_hazard_forward.1} parent=0 // pred_check
    _
  $region35: #{point_seq_hazard_forward.1} parent=0 // pred_check_branch
    %37 = sbr.rel (0) target = $region37
  $region36: #{point_seq_hazard_forward.1} parent=0 // pred_region
    _
  $region37: #{point_seq_hazard_forward.1} parent=0 // pred_fallthru
    _
  // Predicated region
  $region38: #{point_seq_hazard_forward.1} parent=0 // pred_check
    _
  $region39: #{point_seq_hazard_forward.1} parent=0 // pred_check_branch
    %39 = sbr.rel (0) target = $region41
  $region40: #{point_seq_hazard_forward.1} parent=0 // pred_region
    _
  $region41: #{point_seq_hazard_forward.1} parent=0 // pred_fallthru
    _
  // Predicated region
  $region42: #{point_seq_hazard_forward.1} parent=0 // pred_check
    _
  $region43: #{point_seq_hazard_forward.1} parent=0 // pred_check_branch
    %41 = sbr.rel (0) target = $region45
  $region44: #{point_seq_hazard_forward.1} parent=0 // pred_region
    _
  $region45: #{point_seq_hazard_forward.1} parent=0 // pred_fallthru
    _
  // Predicated region
  $region46: #{point_seq_hazard_forward.1} parent=0 // pred_check
    _
  $region47: #{point_seq_hazard_forward.1} parent=0 // pred_check_branch
    %43 = sbr.rel (0) target = $region49
  $region48: #{point_seq_hazard_forward.1} parent=0 // pred_region
    _
  $region49: #{point_seq_hazard_forward.1} parent=0 // pred_fallthru
    _
  // Predicated region
  $region50: #{point_seq_hazard_forward.1} parent=0 // pred_check
    _
  $region51: #{point_seq_hazard_forward.1} parent=0 // pred_check_branch
    %45 = sbr.rel (0) target = $region53
  $region52: #{point_seq_hazard_forward.1} parent=0 // pred_region
    _
  $region53: #{point_seq_hazard_forward.1} parent=0 // pred_fallthru
    _
  %v46 = vld [vmem:[%s2] sm:$0xff]
  %v47 = vld [vmem:[%s3] sm:$0x1f]
  %v48 = vld [vmem:[%s4] sm:$0x1]
  %v50 = vlaneseq
  %v51 = vshrl.u32 %v50, 7
  %v52 = vsub.s32 0, %v51
  %v53 = vrot.slane %v48, %v52
  %vm55 = vcmask 39936
  %v57 = vsel %vm55, %v46, 0
  %vm59 = vcmask 1044480
  %v61 = vsel %vm59, %v47, 0
  %63 = vmatprep.subr.mxu0 0.0
  %64 = vmatpush1.msra.mxu0 0.0
  %65 = vmatprep.subr.mxu0 0.0
  %66 = vmatpush1.msra.mxu0 0.0
  %67 = vmatprep.subr.mxu0 0.0
  %68 = vmatpush1.msra.mxu0 0.0
  %69 = vmatprep.subr.mxu0 0.0
  %70 = vmatpush1.msra.mxu0 0.0
  %71 = vmatprep.subr.mxu0 0.0
  %72 = vmatpush1.msra.mxu0 0.0
  %73 = vmatprep.subr.mxu0 0.0
  %74 = vmatpush1.msra.mxu0 0.0
  %75 = vmatprep.subr.mxu0 0.0
  %76 = vmatpush1.msra.mxu0 0.0
  %77 = vmatprep.subr.mxu0 0.0
  %78 = vmatpush1.msra.mxu0 0.0
  %79 = vmatprep.subr.mxu0 0.0
  %80 = vmatpush1.msra.mxu0 0.0
  %81 = vmatprep.subr.mxu0 0.0
  %82 = vmatpush1.msra.mxu0 0.0
  %83 = vmatprep.subr.mxu0 0.0
  %84 = vmatpush1.msra.mxu0 0.0
  %85 = vmatprep.subr.mxu0 0.0
  %86 = vmatpush1.msra.mxu0 0.0
  %87 = vmatprep.subr.mxu0 0.0
  %88 = vmatpush1.msra.mxu0 0.0
  %89 = vmatprep.subr.mxu0 0.0
  %90 = vmatpush1.msra.mxu0 0.0
  %91 = vmatprep.subr.mxu0 0.0
  %92 = vmatpush1.msra.mxu0 0.0
  %93 = vmatprep.subr.mxu0 0.0
  %94 = vmatpush1.msra.mxu0 %v61
  %95 = vmatprep.subr.mxu0 0.0
  %96 = vmatpush2.msra.mxu0 0.0
  %97 = vmatprep.subr.mxu0 0.0
  %98 = vmatpush2.msra.mxu0 0.0
  %99 = vmatprep.subr.mxu0 0.0
  %100 = vmatpush2.msra.mxu0 0.0
  %101 = vmatprep.subr.mxu0 0.0
  %102 = vmatpush2.msra.mxu0 0.0
  %103 = vmatprep.subr.mxu0 0.0
  %104 = vmatpush2.msra.mxu0 0.0
  %105 = vmatprep.subr.mxu0 0.0
  %106 = vmatpush2.msra.mxu0 0.0
  %107 = vmatprep.subr.mxu0 0.0
  %108 = vmatpush2.msra.mxu0 0.0
  %109 = vmatprep.subr.mxu0 0.0
  %110 = vmatpush2.msra.mxu0 0.0
  %111 = vmatprep.subr.mxu0 0.0
  %112 = vmatpush2.msra.mxu0 0.0
  %113 = vmatprep.subr.mxu0 0.0
  %114 = vmatpush2.msra.mxu0 0.0
  %115 = vmatprep.subr.mxu0 0.0
  %116 = vmatpush2.msra.mxu0 0.0
  %117 = vmatprep.subr.mxu0 0.0
  %118 = vmatpush2.msra.mxu0 0.0
  %119 = vmatprep.subr.mxu0 0.0
  %120 = vmatpush2.msra.mxu0 0.0
  %121 = vmatprep.subr.mxu0 0.0
  %122 = vmatpush2.msra.mxu0 0.0
  %123 = vmatprep.subr.mxu0 0.0
  %124 = vmatpush2.msra.mxu0 0.0
  %125 = vmatprep.subr.mxu0 0.0
  %126 = vmatpush2.msra.mxu0 0.0
  %127 = vmatprep.mubr.f32.mxu0 0.0
  %128 = vmatmul.mubr.f32.gmra.mxu0 %v57
  %v129 = vpop.f32.mrf.mxu0
  %v130 = vadd.f32 %v53, %v129
  %v131 = vpop.f32.mrf.mxu0
  %132 = vdwg.mxu0
  %v133 = vld [vmem:[%s0] sm:$0xff]
  %v134 = vld [vmem:[%s0 + $0x8] sm:$0xff]
  %v135 = vld [vmem:[%s0 + $0x10] sm:$0xff]
  %v136 = vld [vmem:[%s0 + $0x18] sm:$0xff]
  %v137 = vld [vmem:[%s0 + $0x20] sm:$0xff]
  %v138 = vld [vmem:[%s0 + $0x28] sm:$0xff]
  %v139 = vld [vmem:[%s0 + $0x30] sm:$0xff]
  %v140 = vld [vmem:[%s0 + $0x38] sm:$0xff]
  %v141 = vld [vmem:[%s5] sm:$0x3f]
  %v142 = vld [vmem:[%s6] sm:$0x1]
  %v144 = vlaneseq
  %v145 = vshrl.u32 %v144, 7
  %v146 = vsub.s32 0, %v145
  %v147 = vrot.slane %v142, %v146
  %vm149 = vcmask 48128
  %v151 = vsel %vm149, %v133, 0
  %v154 = vsel %vm149, %v134, 0
  %v157 = vsel %vm149, %v135, 0
  %v160 = vsel %vm149, %v136, 0
  %v163 = vsel %vm149, %v137, 0
  %v166 = vsel %vm149, %v138, 0
  %v169 = vsel %vm149, %v139, 0
  %v172 = vsel %vm149, %v140, 0
  %vm174 = vcmask 1045504
  %v176 = vsel %vm174, %v141, 0
  %178 = vmatprep.subr.mxu0 0.0
  %179 = vmatpush1.msra.mxu0 0.0
  %180 = vmatprep.subr.mxu0 0.0
  %181 = vmatpush1.msra.mxu0 0.0
  %182 = vmatprep.subr.mxu0 0.0
  %183 = vmatpush1.msra.mxu0 0.0
  %184 = vmatprep.subr.mxu0 0.0
  %185 = vmatpush1.msra.mxu0 0.0
  %186 = vmatprep.subr.mxu0 0.0
  %187 = vmatpush1.msra.mxu0 0.0
  %188 = vmatprep.subr.mxu0 0.0
  %189 = vmatpush1.msra.mxu0 0.0
  %190 = vmatprep.subr.mxu0 0.0
  %191 = vmatpush1.msra.mxu0 0.0
  %192 = vmatprep.subr.mxu0 0.0
  %193 = vmatpush1.msra.mxu0 0.0
  %194 = vmatprep.subr.mxu0 0.0
  %195 = vmatpush1.msra.mxu0 0.0
  %196 = vmatprep.subr.mxu0 0.0
  %197 = vmatpush1.msra.mxu0 0.0
  %198 = vmatprep.subr.mxu0 0.0
  %199 = vmatpush1.msra.mxu0 0.0
  %200 = vmatprep.subr.mxu0 0.0
  %201 = vmatpush1.msra.mxu0 0.0
  %202 = vmatprep.subr.mxu0 0.0
  %203 = vmatpush1.msra.mxu0 0.0
  %204 = vmatprep.subr.mxu0 0.0
  %205 = vmatpush1.msra.mxu0 0.0
  %206 = vmatprep.subr.mxu0 0.0
  %207 = vmatpush1.msra.mxu0 0.0
  %208 = vmatprep.subr.mxu0 0.0
  %209 = vmatpush1.msra.mxu0 %v176
  %210 = vmatprep.subr.mxu0 0.0
  %211 = vmatpush2.msra.mxu0 0.0
  %212 = vmatprep.subr.mxu0 0.0
  %213 = vmatpush2.msra.mxu0 0.0
  %214 = vmatprep.subr.mxu0 0.0
  %215 = vmatpush2.msra.mxu0 0.0
  %216 = vmatprep.subr.mxu0 0.0
  %217 = vmatpush2.msra.mxu0 0.0
  %218 = vmatprep.subr.mxu0 0.0
  %219 = vmatpush2.msra.mxu0 0.0
  %220 = vmatprep.subr.mxu0 0.0
  %221 = vmatpush2.msra.mxu0 0.0
  %222 = vmatprep.subr.mxu0 0.0
  %223 = vmatpush2.msra.mxu0 0.0
  %224 = vmatprep.subr.mxu0 0.0
  %225 = vmatpush2.msra.mxu0 0.0
  %226 = vmatprep.subr.mxu0 0.0
  %227 = vmatpush2.msra.mxu0 0.0
  %228 = vmatprep.subr.mxu0 0.0
  %229 = vmatpush2.msra.mxu0 0.0
  %230 = vmatprep.subr.mxu0 0.0
  %231 = vmatpush2.msra.mxu0 0.0
  %232 = vmatprep.subr.mxu0 0.0
  %233 = vmatpush2.msra.mxu0 0.0
  %234 = vmatprep.subr.mxu0 0.0
  %235 = vmatpush2.msra.mxu0 0.0
  %236 = vmatprep.subr.mxu0 0.0
  %237 = vmatpush2.msra.mxu0 0.0
  %238 = vmatprep.subr.mxu0 0.0
  %239 = vmatpush2.msra.mxu0 0.0
  %240 = vmatprep.subr.mxu0 0.0
  %241 = vmatpush2.msra.mxu0 0.0
  %242 = vmatprep.mubr.f32.mxu0 0.0
  %243 = vmatmul.mubr.f32.gmra.mxu0 %v151
  %v244 = vpop.f32.mrf.mxu0
  %v245 = vadd.f32 %v147, %v244
  %v246 = vpop.f32.mrf.mxu0
  %247 = vmatprep.mubr.f32.mxu0 0.0
  %248 = vmatmul.mubr.f32.gmra.mxu0 %v154
  %v249 = vpop.f32.mrf.mxu0
  %v250 = vadd.f32 %v147, %v249
  %v251 = vpop.f32.mrf.mxu0
  %252 = vmatprep.mubr.f32.mxu0 0.0
  %253 = vmatmul.mubr.f32.gmra.mxu0 %v157
  %v254 = vpop.f32.mrf.mxu0
  %v255 = vadd.f32 %v147, %v254
  %v256 = vpop.f32.mrf.mxu0
  %257 = vmatprep.mubr.f32.mxu0 0.0
  %258 = vmatmul.mubr.f32.gmra.mxu0 %v160
  %v259 = vpop.f32.mrf.mxu0
  %v260 = vadd.f32 %v147, %v259
  %v261 = vpop.f32.mrf.mxu0
  %262 = vmatprep.mubr.f32.mxu0 0.0
  %263 = vmatmul.mubr.f32.gmra.mxu0 %v163
  %v264 = vpop.f32.mrf.mxu0
  %v265 = vadd.f32 %v147, %v264
  %v266 = vpop.f32.mrf.mxu0
  %267 = vmatprep.mubr.f32.mxu0 0.0
  %268 = vmatmul.mubr.f32.gmra.mxu0 %v166
  %v269 = vpop.f32.mrf.mxu0
  %v270 = vadd.f32 %v147, %v269
  %v271 = vpop.f32.mrf.mxu0
  %272 = vmatprep.mubr.f32.mxu0 0.0
  %273 = vmatmul.mubr.f32.gmra.mxu0 %v169
  %v274 = vpop.f32.mrf.mxu0
  %v275 = vadd.f32 %v147, %v274
  %v276 = vpop.f32.mrf.mxu0
  %277 = vmatprep.mubr.f32.mxu0 0.0
  %278 = vmatmul.mubr.f32.gmra.mxu0 %v172
  %v279 = vpop.f32.mrf.mxu0
  %v280 = vadd.f32 %v147, %v279
  %v281 = vpop.f32.mrf.mxu0
  %282 = vdwg.mxu0
  %vm283 = vcmask 785408
  %284 = vst.msk [vmem:[#allocation2] sm:$0xff] %vm283, %v245
  %285 = vst.msk [vmem:[#allocation2 + $0x8] sm:$0xff] %vm283, %v250
  %286 = vst.msk [vmem:[#allocation2 + $0x10] sm:$0xff] %vm283, %v255
  %287 = vst.msk [vmem:[#allocation2 + $0x18] sm:$0xff] %vm283, %v260
  %288 = vst.msk [vmem:[#allocation2 + $0x20] sm:$0xff] %vm283, %v265
  %289 = vst.msk [vmem:[#allocation2 + $0x28] sm:$0xff] %vm283, %v270
  %290 = vst.msk [vmem:[#allocation2 + $0x30] sm:$0xff] %vm283, %v275
  %291 = vst.msk [vmem:[#allocation2 + $0x38] sm:$0xff] %vm283, %v280
  %v292 = vld [vmem:[%s1] sm:$0xff]
  %v293 = vld [vmem:[%s7] sm:$0xff]
  %v294 = vld [vmem:[%s7 + $0x8] sm:$0xff]
  %v295 = vld [vmem:[%s7 + $0x10] sm:$0xff]
  %v296 = vld [vmem:[%s7 + $0x18] sm:$0xff]
  %v297 = vld [vmem:[%s8] sm:$0x1]
  %v298 = vld [vmem:[#allocation2] ss:$8 sm:$0xf]
  %v299 = vld [vmem:[#allocation2] ss:$8 sm:$0xf0]
  %v300 = vor.u32 %v298, %v299
  %v302 = vlaneseq
  %v303 = vshrl.u32 %v302, 7
  %v304 = vsub.s32 0, %v303
  %v305 = vrot.slane %v297, %v304
  %vm307 = vcmask 261120
  %v309 = vsel %vm307, %v130, 0
  %311 = vmatprep.subr.mxu0 0.0
  %312 = vmatpush1.msra.mxu0 0.0
  %313 = vmatprep.subr.mxu0 0.0
  %314 = vmatpush1.msra.mxu0 0.0
  %315 = vmatprep.subr.mxu0 0.0
  %316 = vmatpush1.msra.mxu0 0.0
  %317 = vmatprep.subr.mxu0 0.0
  %318 = vmatpush1.msra.mxu0 0.0
  %319 = vmatprep.subr.mxu0 0.0
  %320 = vmatpush1.msra.mxu0 0.0
  %321 = vmatprep.subr.mxu0 0.0
  %322 = vmatpush1.msra.mxu0 0.0
  %323 = vmatprep.subr.mxu0 0.0
  %324 = vmatpush1.msra.mxu0 0.0
  %325 = vmatprep.subr.mxu0 0.0
  %326 = vmatpush1.msra.mxu0 0.0
  %327 = vmatprep.subr.mxu0 0.0
  %328 = vmatpush1.msra.mxu0 0.0
  %329 = vmatprep.subr.mxu0 0.0
  %330 = vmatpush1.msra.mxu0 0.0
  %331 = vmatprep.subr.mxu0 0.0
  %332 = vmatpush1.msra.mxu0 0.0
  %333 = vmatprep.subr.mxu0 0.0
  %334 = vmatpush1.msra.mxu0 0.0
  %335 = vmatprep.subr.mxu0 0.0
  %336 = vmatpush1.msra.mxu0 %v296
  %337 = vmatprep.subr.mxu0 0.0
  %338 = vmatpush1.msra.mxu0 %v295
  %339 = vmatprep.subr.mxu0 0.0
  %340 = vmatpush1.msra.mxu0 %v294
  %341 = vmatprep.subr.mxu0 0.0
  %342 = vmatpush1.msra.mxu0 %v293
  %343 = vmatprep.subr.mxu0 0.0
  %344 = vmatpush2.msra.mxu0 0.0
  %345 = vmatprep.subr.mxu0 0.0
  %346 = vmatpush2.msra.mxu0 0.0
  %347 = vmatprep.subr.mxu0 0.0
  %348 = vmatpush2.msra.mxu0 0.0
  %349 = vmatprep.subr.mxu0 0.0
  %350 = vmatpush2.msra.mxu0 0.0
  %351 = vmatprep.subr.mxu0 0.0
  %352 = vmatpush2.msra.mxu0 0.0
  %353 = vmatprep.subr.mxu0 0.0
  %354 = vmatpush2.msra.mxu0 0.0
  %355 = vmatprep.subr.mxu0 0.0
  %356 = vmatpush2.msra.mxu0 0.0
  %357 = vmatprep.subr.mxu0 0.0
  %358 = vmatpush2.msra.mxu0 0.0
  %359 = vmatprep.subr.mxu0 0.0
  %360 = vmatpush2.msra.mxu0 0.0
  %361 = vmatprep.subr.mxu0 0.0
  %362 = vmatpush2.msra.mxu0 0.0
  %363 = vmatprep.subr.mxu0 0.0
  %364 = vmatpush2.msra.mxu0 0.0
  %365 = vmatprep.subr.mxu0 0.0
  %366 = vmatpush2.msra.mxu0 0.0
  %367 = vmatprep.subr.mxu0 0.0
  %368 = vmatpush2.msra.mxu0 0.0
  %369 = vmatprep.subr.mxu0 0.0
  %370 = vmatpush2.msra.mxu0 0.0
  %371 = vmatprep.subr.mxu0 0.0
  %372 = vmatpush2.msra.mxu0 0.0
  %373 = vmatprep.subr.mxu0 0.0
  %374 = vmatpush2.msra.mxu0 0.0
  %375 = vmatprep.mubr.f32.mxu0 0.0
  %376 = vmatmul.mubr.f32.gmra.mxu0 %v309
  %v377 = vpop.f32.mrf.mxu0
  %v378 = vadd.f32 %v305, %v377
  %v379 = vpop.f32.mrf.mxu0
  %380 = vdwg.mxu0
  %v381 = vadd.f32 %v300, %v378
  %v382 = vxor.u32 %v381, 2147483648
  %v383 = vmul.f32 %v382, 1.442695
  %v384 = vpow.pop %v383
  %v385 = vadd.f32 %v384, 1.0
  %v386 = vrcp.pop %v385
  %v387 = vmul.f32 1.0, %v386
  %389 = vrot.lane.b32.xlu0 %v378, 64
  %v390 = vpop.permute.xlu0 %389
  %v392 = vmul.f32 %v387, %v390
  %394 = vrot.lane.b32.xlu0 %v392, 64
  %v395 = vpop.permute.xlu0 %394
  %v397 = vadd.f32 %v300, %v395
  %v398 = vtanh.pop %v397
  %v399 = vsub.f32 1.0, %v387
  %401 = vrot.lane.b32.xlu0 %v398, 96
  %v402 = vpop.permute.xlu0 %401
  %v404 = vmul.f32 %v399, %v402
  %405 = vrot.lane.b32.xlu0 %v130, 32
  %v406 = vpop.permute.xlu0 %405
  %v408 = vmul.f32 %v387, %v406
  %v409 = vadd.f32 %v404, %v408
  %vm410 = vcmp.gt.s32.totalorder %v292, 0
  %v411 = vsel %vm410, 1, 0
  %412 = vset.pattern.permute.xlu0 0
  %413 = vperm.xlu0 %412, %v411
  %v414 = vpop.permute.xlu0 %413
  %vm415 = vcmp.eq.s32.totalorder %v414, 1
  %v416 = vsel %vm415, %v409, %v406
  %s417 = scalar_lea.vmem [#allocation2], 1
  %v418 = vld [vmem:[%s417] ss:$8 sm:$0xf]
  %v419 = vld [vmem:[%s417] ss:$8 sm:$0xf0]
  %v420 = vor.u32 %v418, %v419
  %422 = vrot.lane.b32.xlu0 %v416, 96
  %v423 = vpop.permute.xlu0 %422
  %v424 = vsel %vm307, %v423, 0
  %426 = vmatprep.subr.mxu0 0.0
  %427 = vmatpush1.msra.mxu0 0.0
  %428 = vmatprep.subr.mxu0 0.0
  %429 = vmatpush1.msra.mxu0 0.0
  %430 = vmatprep.subr.mxu0 0.0
  %431 = vmatpush1.msra.mxu0 0.0
  %432 = vmatprep.subr.mxu0 0.0
  %433 = vmatpush1.msra.mxu0 0.0
  %434 = vmatprep.subr.mxu0 0.0
  %435 = vmatpush1.msra.mxu0 0.0
  %436 = vmatprep.subr.mxu0 0.0
  %437 = vmatpush1.msra.mxu0 0.0
  %438 = vmatprep.subr.mxu0 0.0
  %439 = vmatpush1.msra.mxu0 0.0
  %440 = vmatprep.subr.mxu0 0.0
  %441 = vmatpush1.msra.mxu0 0.0
  %442 = vmatprep.subr.mxu0 0.0
  %443 = vmatpush1.msra.mxu0 0.0
  %444 = vmatprep.subr.mxu0 0.0
  %445 = vmatpush1.msra.mxu0 0.0
  %446 = vmatprep.subr.mxu0 0.0
  %447 = vmatpush1.msra.mxu0 0.0
  %448 = vmatprep.subr.mxu0 0.0
  %449 = vmatpush1.msra.mxu0 0.0
  %450 = vmatprep.subr.mxu0 0.0
  %451 = vmatpush1.msra.mxu0 %v296
  %452 = vmatprep.subr.mxu0 0.0
  %453 = vmatpush1.msra.mxu0 %v295
  %454 = vmatprep.subr.mxu0 0.0
  %455 = vmatpush1.msra.mxu0 %v294
  %456 = vmatprep.subr.mxu0 0.0
  %457 = vmatpush1.msra.mxu0 %v293
  %458 = vmatprep.subr.mxu0 0.0
  %459 = vmatpush2.msra.mxu0 0.0
  %460 = vmatprep.subr.mxu0 0.0
  %461 = vmatpush2.msra.mxu0 0.0
  %462 = vmatprep.subr.mxu0 0.0
  %463 = vmatpush2.msra.mxu0 0.0
  %464 = vmatprep.subr.mxu0 0.0
  %465 = vmatpush2.msra.mxu0 0.0
  %466 = vmatprep.subr.mxu0 0.0
  %467 = vmatpush2.msra.mxu0 0.0
  %468 = vmatprep.subr.mxu0 0.0
  %469 = vmatpush2.msra.mxu0 0.0
  %470 = vmatprep.subr.mxu0 0.0
  %471 = vmatpush2.msra.mxu0 0.0
  %472 = vmatprep.subr.mxu0 0.0
  %473 = vmatpush2.msra.mxu0 0.0
  %474 = vmatprep.subr.mxu0 0.0
  %475 = vmatpush2.msra.mxu0 0.0
  %476 = vmatprep.subr.mxu0 0.0
  %477 = vmatpush2.msra.mxu0 0.0
  %478 = vmatprep.subr.mxu0 0.0
  %479 = vmatpush2.msra.mxu0 0.0
  %480 = vmatprep.subr.mxu0 0.0
  %481 = vmatpush2.msra.mxu0 0.0
  %482 = vmatprep.subr.mxu0 0.0
  %483 = vmatpush2.msra.mxu0 0.0
  %484 = vmatprep.subr.mxu0 0.0
  %485 = vmatpush2.msra.mxu0 0.0
  %486 = vmatprep.subr.mxu0 0.0
  %487 = vmatpush2.msra.mxu0 0.0
  %488 = vmatprep.subr.mxu0 0.0
  %489 = vmatpush2.msra.mxu0 0.0
  %490 = vmatprep.mubr.f32.mxu0 0.0
  %491 = vmatmul.mubr.f32.gmra.mxu0 %v424
  %v492 = vpop.f32.mrf.mxu0
  %v493 = vadd.f32 %v305, %v492
  %v494 = vpop.f32.mrf.mxu0
  %495 = vdwg.mxu0
  %v496 = vadd.f32 %v420, %v493
  %v497 = vxor.u32 %v496, 2147483648
  %v498 = vmul.f32 %v497, 1.442695
  %v499 = vpow.pop %v498
  %v500 = vadd.f32 %v499, 1.0
  %v501 = vrcp.pop %v500
  %v502 = vmul.f32 1.0, %v501
  %504 = vrot.lane.b32.xlu0 %v493, 64
  %v505 = vpop.permute.xlu0 %504
  %v507 = vmul.f32 %v502, %v505
  %509 = vrot.lane.b32.xlu0 %v507, 64
  %v510 = vpop.permute.xlu0 %509
  %v512 = vadd.f32 %v420, %v510
  %v513 = vtanh.pop %v512
  %v514 = vsub.f32 1.0, %v502
  %516 = vrot.lane.b32.xlu0 %v513, 96
  %v517 = vpop.permute.xlu0 %516
  %v519 = vmul.f32 %v514, %v517
  %v520 = vmul.f32 %v502, %v416
  %v521 = vadd.f32 %v519, %v520
  %vm522 = vcmp.gt.s32.totalorder %v292, 1
  %v523 = vsel %vm522, 1, 0
  %524 = vset.pattern.permute.xlu0 0
  %525 = vperm.xlu0 %524, %v523
  %v526 = vpop.permute.xlu0 %525
  %vm527 = vcmp.eq.s32.totalorder %v526, 1
  %v528 = vsel %vm527, %v521, %v416
  %s529 = scalar_lea.vmem [#allocation2], 2
  %v530 = vld [vmem:[%s529] ss:$8 sm:$0xf]
  %v531 = vld [vmem:[%s529] ss:$8 sm:$0xf0]
  %v532 = vor.u32 %v530, %v531
  %534 = vrot.lane.b32.xlu0 %v528, 96
  %v535 = vpop.permute.xlu0 %534
  %v536 = vsel %vm307, %v535, 0
  %538 = vmatprep.subr.mxu0 0.0
  %539 = vmatpush1.msra.mxu0 0.0
  %540 = vmatprep.subr.mxu0 0.0
  %541 = vmatpush1.msra.mxu0 0.0
  %542 = vmatprep.subr.mxu0 0.0
  %543 = vmatpush1.msra.mxu0 0.0
  %544 = vmatprep.subr.mxu0 0.0
  %545 = vmatpush1.msra.mxu0 0.0
  %546 = vmatprep.subr.mxu0 0.0
  %547 = vmatpush1.msra.mxu0 0.0
  %548 = vmatprep.subr.mxu0 0.0
  %549 = vmatpush1.msra.mxu0 0.0
  %550 = vmatprep.subr.mxu0 0.0
  %551 = vmatpush1.msra.mxu0 0.0
  %552 = vmatprep.subr.mxu0 0.0
  %553 = vmatpush1.msra.mxu0 0.0
  %554 = vmatprep.subr.mxu0 0.0
  %555 = vmatpush1.msra.mxu0 0.0
  %556 = vmatprep.subr.mxu0 0.0
  %557 = vmatpush1.msra.mxu0 0.0
  %558 = vmatprep.subr.mxu0 0.0
  %559 = vmatpush1.msra.mxu0 0.0
  %560 = vmatprep.subr.mxu0 0.0
  %561 = vmatpush1.msra.mxu0 0.0
  %562 = vmatprep.subr.mxu0 0.0
  %563 = vmatpush1.msra.mxu0 %v296
  %564 = vmatprep.subr.mxu0 0.0
  %565 = vmatpush1.msra.mxu0 %v295
  %566 = vmatprep.subr.mxu0 0.0
  %567 = vmatpush1.msra.mxu0 %v294
  %568 = vmatprep.subr.mxu0 0.0
  %569 = vmatpush1.msra.mxu0 %v293
  %570 = vmatprep.subr.mxu0 0.0
  %571 = vmatpush2.msra.mxu0 0.0
  %572 = vmatprep.subr.mxu0 0.0
  %573 = vmatpush2.msra.mxu0 0.0
  %574 = vmatprep.subr.mxu0 0.0
  %575 = vmatpush2.msra.mxu0 0.0
  %576 = vmatprep.subr.mxu0 0.0
  %577 = vmatpush2.msra.mxu0 0.0
  %578 = vmatprep.subr.mxu0 0.0
  %579 = vmatpush2.msra.mxu0 0.0
  %580 = vmatprep.subr.mxu0 0.0
  %581 = vmatpush2.msra.mxu0 0.0
  %582 = vmatprep.subr.mxu0 0.0
  %583 = vmatpush2.msra.mxu0 0.0
  %584 = vmatprep.subr.mxu0 0.0
  %585 = vmatpush2.msra.mxu0 0.0
  %586 = vmatprep.subr.mxu0 0.0
  %587 = vmatpush2.msra.mxu0 0.0
  %588 = vmatprep.subr.mxu0 0.0
  %589 = vmatpush2.msra.mxu0 0.0
  %590 = vmatprep.subr.mxu0 0.0
  %591 = vmatpush2.msra.mxu0 0.0
  %592 = vmatprep.subr.mxu0 0.0
  %593 = vmatpush2.msra.mxu0 0.0
  %594 = vmatprep.subr.mxu0 0.0
  %595 = vmatpush2.msra.mxu0 0.0
  %596 = vmatprep.subr.mxu0 0.0
  %597 = vmatpush2.msra.mxu0 0.0
  %598 = vmatprep.subr.mxu0 0.0
  %599 = vmatpush2.msra.mxu0 0.0
  %600 = vmatprep.subr.mxu0 0.0
  %601 = vmatpush2.msra.mxu0 0.0
  %602 = vmatprep.mubr.f32.mxu0 0.0
  %603 = vmatmul.mubr.f32.gmra.mxu0 %v536
  %v604 = vpop.f32.mrf.mxu0
  %v605 = vadd.f32 %v305, %v604
  %v606 = vpop.f32.mrf.mxu0
  %607 = vdwg.mxu0
  %v608 = vadd.f32 %v532, %v605
  %v609 = vxor.u32 %v608, 2147483648
  %v610 = vmul.f32 %v609, 1.442695
  %v611 = vpow.pop %v610
  %v612 = vadd.f32 %v611, 1.0
  %v613 = vrcp.pop %v612
  %v614 = vmul.f32 1.0, %v613
  %616 = vrot.lane.b32.xlu0 %v605, 64
  %v617 = vpop.permute.xlu0 %616
  %v619 = vmul.f32 %v614, %v617
  %621 = vrot.lane.b32.xlu0 %v619, 64
  %v622 = vpop.permute.xlu0 %621
  %v624 = vadd.f32 %v532, %v622
  %v625 = vtanh.pop %v624
  %v626 = vsub.f32 1.0, %v614
  %628 = vrot.lane.b32.xlu0 %v625, 96
  %v629 = vpop.permute.xlu0 %628
  %v631 = vmul.f32 %v626, %v629
  %v632 = vmul.f32 %v614, %v528
  %v633 = vadd.f32 %v631, %v632
  %vm634 = vcmp.gt.s32.totalorder %v292, 2
  %v635 = vsel %vm634, 1, 0
  %636 = vset.pattern.permute.xlu0 0
  %637 = vperm.xlu0 %636, %v635
  %v638 = vpop.permute.xlu0 %637
  %vm639 = vcmp.eq.s32.totalorder %v638, 1
  %v640 = vsel %vm639, %v633, %v528
  %s641 = scalar_lea.vmem [#allocation2], 3
  %v642 = vld [vmem:[%s641] ss:$8 sm:$0xf]
  %v643 = vld [vmem:[%s641] ss:$8 sm:$0xf0]
  %v644 = vor.u32 %v642, %v643
  %646 = vrot.lane.b32.xlu0 %v640, 96
  %v647 = vpop.permute.xlu0 %646
  %v648 = vsel %vm307, %v647, 0
  %650 = vmatprep.subr.mxu0 0.0
  %651 = vmatpush1.msra.mxu0 0.0
  %652 = vmatprep.subr.mxu0 0.0
  %653 = vmatpush1.msra.mxu0 0.0
  %654 = vmatprep.subr.mxu0 0.0
  %655 = vmatpush1.msra.mxu0 0.0
  %656 = vmatprep.subr.mxu0 0.0
  %657 = vmatpush1.msra.mxu0 0.0
  %658 = vmatprep.subr.mxu0 0.0
  %659 = vmatpush1.msra.mxu0 0.0
  %660 = vmatprep.subr.mxu0 0.0
  %661 = vmatpush1.msra.mxu0 0.0
  %662 = vmatprep.subr.mxu0 0.0
  %663 = vmatpush1.msra.mxu0 0.0
  %664 = vmatprep.subr.mxu0 0.0
  %665 = vmatpush1.msra.mxu0 0.0
  %666 = vmatprep.subr.mxu0 0.0
  %667 = vmatpush1.msra.mxu0 0.0
  %668 = vmatprep.subr.mxu0 0.0
  %669 = vmatpush1.msra.mxu0 0.0
  %670 = vmatprep.subr.mxu0 0.0
  %671 = vmatpush1.msra.mxu0 0.0
  %672 = vmatprep.subr.mxu0 0.0
  %673 = vmatpush1.msra.mxu0 0.0
  %674 = vmatprep.subr.mxu0 0.0
  %675 = vmatpush1.msra.mxu0 %v296
  %676 = vmatprep.subr.mxu0 0.0
  %677 = vmatpush1.msra.mxu0 %v295
  %678 = vmatprep.subr.mxu0 0.0
  %679 = vmatpush1.msra.mxu0 %v294
  %680 = vmatprep.subr.mxu0 0.0
  %681 = vmatpush1.msra.mxu0 %v293
  %682 = vmatprep.subr.mxu0 0.0
  %683 = vmatpush2.msra.mxu0 0.0
  %684 = vmatprep.subr.mxu0 0.0
  %685 = vmatpush2.msra.mxu0 0.0
  %686 = vmatprep.subr.mxu0 0.0
  %687 = vmatpush2.msra.mxu0 0.0
  %688 = vmatprep.subr.mxu0 0.0
  %689 = vmatpush2.msra.mxu0 0.0
  %690 = vmatprep.subr.mxu0 0.0
  %691 = vmatpush2.msra.mxu0 0.0
  %692 = vmatprep.subr.mxu0 0.0
  %693 = vmatpush2.msra.mxu0 0.0
  %694 = vmatprep.subr.mxu0 0.0
  %695 = vmatpush2.msra.mxu0 0.0
  %696 = vmatprep.subr.mxu0 0.0
  %697 = vmatpush2.msra.mxu0 0.0
  %698 = vmatprep.subr.mxu0 0.0
  %699 = vmatpush2.msra.mxu0 0.0
  %700 = vmatprep.subr.mxu0 0.0
  %701 = vmatpush2.msra.mxu0 0.0
  %702 = vmatprep.subr.mxu0 0.0
  %703 = vmatpush2.msra.mxu0 0.0
  %704 = vmatprep.subr.mxu0 0.0
  %705 = vmatpush2.msra.mxu0 0.0
  %706 = vmatprep.subr.mxu0 0.0
  %707 = vmatpush2.msra.mxu0 0.0
  %708 = vmatprep.subr.mxu0 0.0
  %709 = vmatpush2.msra.mxu0 0.0
  %710 = vmatprep.subr.mxu0 0.0
  %711 = vmatpush2.msra.mxu0 0.0
  %712 = vmatprep.subr.mxu0 0.0
  %713 = vmatpush2.msra.mxu0 0.0
  %714 = vmatprep.mubr.f32.mxu0 0.0
  %715 = vmatmul.mubr.f32.gmra.mxu0 %v648
  %v716 = vpop.f32.mrf.mxu0
  %v717 = vadd.f32 %v305, %v716
  %v718 = vpop.f32.mrf.mxu0
  %719 = vdwg.mxu0
  %v720 = vadd.f32 %v644, %v717
  %v721 = vxor.u32 %v720, 2147483648
  %v722 = vmul.f32 %v721, 1.442695
  %v723 = vpow.pop %v722
  %v724 = vadd.f32 %v723, 1.0
  %v725 = vrcp.pop %v724
  %v726 = vmul.f32 1.0, %v725
  %728 = vrot.lane.b32.xlu0 %v717, 64
  %v729 = vpop.permute.xlu0 %728
  %v731 = vmul.f32 %v726, %v729
  %733 = vrot.lane.b32.xlu0 %v731, 64
  %v734 = vpop.permute.xlu0 %733
  %v736 = vadd.f32 %v644, %v734
  %v737 = vtanh.pop %v736
  %v738 = vsub.f32 1.0, %v726
  %740 = vrot.lane.b32.xlu0 %v737, 96
  %v741 = vpop.permute.xlu0 %740
  %v743 = vmul.f32 %v738, %v741
  %v744 = vmul.f32 %v726, %v640
  %v745 = vadd.f32 %v743, %v744
  %vm746 = vcmp.gt.s32.totalorder %v292, 3
  %v747 = vsel %vm746, 1, 0
  %748 = vset.pattern.permute.xlu0 0
  %749 = vperm.xlu0 %748, %v747
  %v750 = vpop.permute.xlu0 %749
  %vm751 = vcmp.eq.s32.totalorder %v750, 1
  %v752 = vsel %vm751, %v745, %v640
  %s753 = scalar_lea.vmem [#allocation2], 4
  %v754 = vld [vmem:[%s753] ss:$8 sm:$0xf]
  %v755 = vld [vmem:[%s753] ss:$8 sm:$0xf0]
  %v756 = vor.u32 %v754, %v755
  %758 = vrot.lane.b32.xlu0 %v752, 96
  %v759 = vpop.permute.xlu0 %758
  %v760 = vsel %vm307, %v759, 0
  %762 = vmatprep.subr.mxu0 0.0
  %763 = vmatpush1.msra.mxu0 0.0
  %764 = vmatprep.subr.mxu0 0.0
  %765 = vmatpush1.msra.mxu0 0.0
  %766 = vmatprep.subr.mxu0 0.0
  %767 = vmatpush1.msra.mxu0 0.0
  %768 = vmatprep.subr.mxu0 0.0
  %769 = vmatpush1.msra.mxu0 0.0
  %770 = vmatprep.subr.mxu0 0.0
  %771 = vmatpush1.msra.mxu0 0.0
  %772 = vmatprep.subr.mxu0 0.0
  %773 = vmatpush1.msra.mxu0 0.0
  %774 = vmatprep.subr.mxu0 0.0
  %775 = vmatpush1.msra.mxu0 0.0
  %776 = vmatprep.subr.mxu0 0.0
  %777 = vmatpush1.msra.mxu0 0.0
  %778 = vmatprep.subr.mxu0 0.0
  %779 = vmatpush1.msra.mxu0 0.0
  %780 = vmatprep.subr.mxu0 0.0
  %781 = vmatpush1.msra.mxu0 0.0
  %782 = vmatprep.subr.mxu0 0.0
  %783 = vmatpush1.msra.mxu0 0.0
  %784 = vmatprep.subr.mxu0 0.0
  %785 = vmatpush1.msra.mxu0 0.0
  %786 = vmatprep.subr.mxu0 0.0
  %787 = vmatpush1.msra.mxu0 %v296
  %788 = vmatprep.subr.mxu0 0.0
  %789 = vmatpush1.msra.mxu0 %v295
  %790 = vmatprep.subr.mxu0 0.0
  %791 = vmatpush1.msra.mxu0 %v294
  %792 = vmatprep.subr.mxu0 0.0
  %793 = vmatpush1.msra.mxu0 %v293
  %794 = vmatprep.subr.mxu0 0.0
  %795 = vmatpush2.msra.mxu0 0.0
  %796 = vmatprep.subr.mxu0 0.0
  %797 = vmatpush2.msra.mxu0 0.0
  %798 = vmatprep.subr.mxu0 0.0
  %799 = vmatpush2.msra.mxu0 0.0
  %800 = vmatprep.subr.mxu0 0.0
  %801 = vmatpush2.msra.mxu0 0.0
  %802 = vmatprep.subr.mxu0 0.0
  %803 = vmatpush2.msra.mxu0 0.0
  %804 = vmatprep.subr.mxu0 0.0
  %805 = vmatpush2.msra.mxu0 0.0
  %806 = vmatprep.subr.mxu0 0.0
  %807 = vmatpush2.msra.mxu0 0.0
  %808 = vmatprep.subr.mxu0 0.0
  %809 = vmatpush2.msra.mxu0 0.0
  %810 = vmatprep.subr.mxu0 0.0
  %811 = vmatpush2.msra.mxu0 0.0
  %812 = vmatprep.subr.mxu0 0.0
  %813 = vmatpush2.msra.mxu0 0.0
  %814 = vmatprep.subr.mxu0 0.0
  %815 = vmatpush2.msra.mxu0 0.0
  %816 = vmatprep.subr.mxu0 0.0
  %817 = vmatpush2.msra.mxu0 0.0
  %818 = vmatprep.subr.mxu0 0.0
  %819 = vmatpush2.msra.mxu0 0.0
  %820 = vmatprep.subr.mxu0 0.0
  %821 = vmatpush2.msra.mxu0 0.0
  %822 = vmatprep.subr.mxu0 0.0
  %823 = vmatpush2.msra.mxu0 0.0
  %824 = vmatprep.subr.mxu0 0.0
  %825 = vmatpush2.msra.mxu0 0.0
  %826 = vmatprep.mubr.f32.mxu0 0.0
  %827 = vmatmul.mubr.f32.gmra.mxu0 %v760
  %v828 = vpop.f32.mrf.mxu0
  %v829 = vadd.f32 %v305, %v828
  %v830 = vpop.f32.mrf.mxu0
  %831 = vdwg.mxu0
  %v832 = vadd.f32 %v756, %v829
  %v833 = vxor.u32 %v832, 2147483648
  %v834 = vmul.f32 %v833, 1.442695
  %v835 = vpow.pop %v834
  %v836 = vadd.f32 %v835, 1.0
  %v837 = vrcp.pop %v836
  %v838 = vmul.f32 1.0, %v837
  %840 = vrot.lane.b32.xlu0 %v829, 64
  %v841 = vpop.permute.xlu0 %840
  %v843 = vmul.f32 %v838, %v841
  %845 = vrot.lane.b32.xlu0 %v843, 64
  %v846 = vpop.permute.xlu0 %845
  %v848 = vadd.f32 %v756, %v846
  %v849 = vtanh.pop %v848
  %v850 = vsub.f32 1.0, %v838
  %852 = vrot.lane.b32.xlu0 %v849, 96
  %v853 = vpop.permute.xlu0 %852
  %v855 = vmul.f32 %v850, %v853
  %v856 = vmul.f32 %v838, %v752
  %v857 = vadd.f32 %v855, %v856
  %vm858 = vcmp.gt.s32.totalorder %v292, 4
  %v859 = vsel %vm858, 1, 0
  %860 = vset.pattern.permute.xlu0 0
  %861 = vperm.xlu0 %860, %v859
  %v862 = vpop.permute.xlu0 %861
  %vm863 = vcmp.eq.s32.totalorder %v862, 1
  %v864 = vsel %vm863, %v857, %v752
  %s865 = scalar_lea.vmem [#allocation2], 5
  %v866 = vld [vmem:[%s865] ss:$8 sm:$0xf]
  %v867 = vld [vmem:[%s865] ss:$8 sm:$0xf0]
  %v868 = vor.u32 %v866, %v867
  %870 = vrot.lane.b32.xlu0 %v864, 96
  %v871 = vpop.permute.xlu0 %870
  %v872 = vsel %vm307, %v871, 0
  %874 = vmatprep.subr.mxu0 0.0
  %875 = vmatpush1.msra.mxu0 0.0
  %876 = vmatprep.subr.mxu0 0.0
  %877 = vmatpush1.msra.mxu0 0.0
  %878 = vmatprep.subr.mxu0 0.0
  %879 = vmatpush1.msra.mxu0 0.0
  %880 = vmatprep.subr.mxu0 0.0
  %881 = vmatpush1.msra.mxu0 0.0
  %882 = vmatprep.subr.mxu0 0.0
  %883 = vmatpush1.msra.mxu0 0.0
  %884 = vmatprep.subr.mxu0 0.0
  %885 = vmatpush1.msra.mxu0 0.0
  %886 = vmatprep.subr.mxu0 0.0
  %887 = vmatpush1.msra.mxu0 0.0
  %888 = vmatprep.subr.mxu0 0.0
  %889 = vmatpush1.msra.mxu0 0.0
  %890 = vmatprep.subr.mxu0 0.0
  %891 = vmatpush1.msra.mxu0 0.0
  %892 = vmatprep.subr.mxu0 0.0
  %893 = vmatpush1.msra.mxu0 0.0
  %894 = vmatprep.subr.mxu0 0.0
  %895 = vmatpush1.msra.mxu0 0.0
  %896 = vmatprep.subr.mxu0 0.0
  %897 = vmatpush1.msra.mxu0 0.0
  %898 = vmatprep.subr.mxu0 0.0
  %899 = vmatpush1.msra.mxu0 %v296
  %900 = vmatprep.subr.mxu0 0.0
  %901 = vmatpush1.msra.mxu0 %v295
  %902 = vmatprep.subr.mxu0 0.0
  %903 = vmatpush1.msra.mxu0 %v294
  %904 = vmatprep.subr.mxu0 0.0
  %905 = vmatpush1.msra.mxu0 %v293
  %906 = vmatprep.subr.mxu0 0.0
  %907 = vmatpush2.msra.mxu0 0.0
  %908 = vmatprep.subr.mxu0 0.0
  %909 = vmatpush2.msra.mxu0 0.0
  %910 = vmatprep.subr.mxu0 0.0
  %911 = vmatpush2.msra.mxu0 0.0
  %912 = vmatprep.subr.mxu0 0.0
  %913 = vmatpush2.msra.mxu0 0.0
  %914 = vmatprep.subr.mxu0 0.0
  %915 = vmatpush2.msra.mxu0 0.0
  %916 = vmatprep.subr.mxu0 0.0
  %917 = vmatpush2.msra.mxu0 0.0
  %918 = vmatprep.subr.mxu0 0.0
  %919 = vmatpush2.msra.mxu0 0.0
  %920 = vmatprep.subr.mxu0 0.0
  %921 = vmatpush2.msra.mxu0 0.0
  %922 = vmatprep.subr.mxu0 0.0
  %923 = vmatpush2.msra.mxu0 0.0
  %924 = vmatprep.subr.mxu0 0.0
  %925 = vmatpush2.msra.mxu0 0.0
  %926 = vmatprep.subr.mxu0 0.0
  %927 = vmatpush2.msra.mxu0 0.0
  %928 = vmatprep.subr.mxu0 0.0
  %929 = vmatpush2.msra.mxu0 0.0
  %930 = vmatprep.subr.mxu0 0.0
  %931 = vmatpush2.msra.mxu0 0.0
  %932 = vmatprep.subr.mxu0 0.0
  %933 = vmatpush2.msra.mxu0 0.0
  %934 = vmatprep.subr.mxu0 0.0
  %935 = vmatpush2.msra.mxu0 0.0
  %936 = vmatprep.subr.mxu0 0.0
  %937 = vmatpush2.msra.mxu0 0.0
  %938 = vmatprep.mubr.f32.mxu0 0.0
  %939 = vmatmul.mubr.f32.gmra.mxu0 %v872
  %v940 = vpop.f32.mrf.mxu0
  %v941 = vadd.f32 %v305, %v940
  %v942 = vpop.f32.mrf.mxu0
  %943 = vdwg.mxu0
  %v944 = vadd.f32 %v868, %v941
  %v945 = vxor.u32 %v944, 2147483648
  %v946 = vmul.f32 %v945, 1.442695
  %v947 = vpow.pop %v946
  %v948 = vadd.f32 %v947, 1.0
  %v949 = vrcp.pop %v948
  %v950 = vmul.f32 1.0, %v949
  %952 = vrot.lane.b32.xlu0 %v941, 64
  %v953 = vpop.permute.xlu0 %952
  %v955 = vmul.f32 %v950, %v953
  %957 = vrot.lane.b32.xlu0 %v955, 64
  %v958 = vpop.permute.xlu0 %957
  %v960 = vadd.f32 %v868, %v958
  %v961 = vtanh.pop %v960
  %v962 = vsub.f32 1.0, %v950
  %964 = vrot.lane.b32.xlu0 %v961, 96
  %v965 = vpop.permute.xlu0 %964
  %v967 = vmul.f32 %v962, %v965
  %v968 = vmul.f32 %v950, %v864
  %v969 = vadd.f32 %v967, %v968
  %vm970 = vcmp.gt.s32.totalorder %v292, 5
  %v971 = vsel %vm970, 1, 0
  %972 = vset.pattern.permute.xlu0 0
  %973 = vperm.xlu0 %972, %v971
  %v974 = vpop.permute.xlu0 %973
  %vm975 = vcmp.eq.s32.totalorder %v974, 1
  %v976 = vsel %vm975, %v969, %v864
  %s977 = scalar_lea.vmem [#allocation2], 6
  %v978 = vld [vmem:[%s977] ss:$8 sm:$0xf]
  %v979 = vld [vmem:[%s977] ss:$8 sm:$0xf0]
  %v980 = vor.u32 %v978, %v979
  %982 = vrot.lane.b32.xlu0 %v976, 96
  %v983 = vpop.permute.xlu0 %982
  %v984 = vsel %vm307, %v983, 0
  %986 = vmatprep.subr.mxu0 0.0
  %987 = vmatpush1.msra.mxu0 0.0
  %988 = vmatprep.subr.mxu0 0.0
  %989 = vmatpush1.msra.mxu0 0.0
  %990 = vmatprep.subr.mxu0 0.0
  %991 = vmatpush1.msra.mxu0 0.0
  %992 = vmatprep.subr.mxu0 0.0
  %993 = vmatpush1.msra.mxu0 0.0
  %994 = vmatprep.subr.mxu0 0.0
  %995 = vmatpush1.msra.mxu0 0.0
  %996 = vmatprep.subr.mxu0 0.0
  %997 = vmatpush1.msra.mxu0 0.0
  %998 = vmatprep.subr.mxu0 0.0
  %999 = vmatpush1.msra.mxu0 0.0
  %1000 = vmatprep.subr.mxu0 0.0
  %1001 = vmatpush1.msra.mxu0 0.0
  %1002 = vmatprep.subr.mxu0 0.0
  %1003 = vmatpush1.msra.mxu0 0.0
  %1004 = vmatprep.subr.mxu0 0.0
  %1005 = vmatpush1.msra.mxu0 0.0
  %1006 = vmatprep.subr.mxu0 0.0
  %1007 = vmatpush1.msra.mxu0 0.0
  %1008 = vmatprep.subr.mxu0 0.0
  %1009 = vmatpush1.msra.mxu0 0.0
  %1010 = vmatprep.subr.mxu0 0.0
  %1011 = vmatpush1.msra.mxu0 %v296
  %1012 = vmatprep.subr.mxu0 0.0
  %1013 = vmatpush1.msra.mxu0 %v295
  %1014 = vmatprep.subr.mxu0 0.0
  %1015 = vmatpush1.msra.mxu0 %v294
  %1016 = vmatprep.subr.mxu0 0.0
  %1017 = vmatpush1.msra.mxu0 %v293
  %1018 = vmatprep.subr.mxu0 0.0
  %1019 = vmatpush2.msra.mxu0 0.0
  %1020 = vmatprep.subr.mxu0 0.0
  %1021 = vmatpush2.msra.mxu0 0.0
  %1022 = vmatprep.subr.mxu0 0.0
  %1023 = vmatpush2.msra.mxu0 0.0
  %1024 = vmatprep.subr.mxu0 0.0
  %1025 = vmatpush2.msra.mxu0 0.0
  %1026 = vmatprep.subr.mxu0 0.0
  %1027 = vmatpush2.msra.mxu0 0.0
  %1028 = vmatprep.subr.mxu0 0.0
  %1029 = vmatpush2.msra.mxu0 0.0
  %1030 = vmatprep.subr.mxu0 0.0
  %1031 = vmatpush2.msra.mxu0 0.0
  %1032 = vmatprep.subr.mxu0 0.0
  %1033 = vmatpush2.msra.mxu0 0.0
  %1034 = vmatprep.subr.mxu0 0.0
  %1035 = vmatpush2.msra.mxu0 0.0
  %1036 = vmatprep.subr.mxu0 0.0
  %1037 = vmatpush2.msra.mxu0 0.0
  %1038 = vmatprep.subr.mxu0 0.0
  %1039 = vmatpush2.msra.mxu0 0.0
  %1040 = vmatprep.subr.mxu0 0.0
  %1041 = vmatpush2.msra.mxu0 0.0
  %1042 = vmatprep.subr.mxu0 0.0
  %1043 = vmatpush2.msra.mxu0 0.0
  %1044 = vmatprep.subr.mxu0 0.0
  %1045 = vmatpush2.msra.mxu0 0.0
  %1046 = vmatprep.subr.mxu0 0.0
  %1047 = vmatpush2.msra.mxu0 0.0
  %1048 = vmatprep.subr.mxu0 0.0
  %1049 = vmatpush2.msra.mxu0 0.0
  %1050 = vmatprep.mubr.f32.mxu0 0.0
  %1051 = vmatmul.mubr.f32.gmra.mxu0 %v984
  %v1052 = vpop.f32.mrf.mxu0
  %v1053 = vadd.f32 %v305, %v1052
  %v1054 = vpop.f32.mrf.mxu0
  %1055 = vdwg.mxu0
  %v1056 = vadd.f32 %v980, %v1053
  %v1057 = vxor.u32 %v1056, 2147483648
  %v1058 = vmul.f32 %v1057, 1.442695
  %v1059 = vpow.pop %v1058
  %v1060 = vadd.f32 %v1059, 1.0
  %v1061 = vrcp.pop %v1060
  %v1062 = vmul.f32 1.0, %v1061
  %1064 = vrot.lane.b32.xlu0 %v1053, 64
  %v1065 = vpop.permute.xlu0 %1064
  %v1067 = vmul.f32 %v1062, %v1065
  %1069 = vrot.lane.b32.xlu0 %v1067, 64
  %v1070 = vpop.permute.xlu0 %1069
  %v1072 = vadd.f32 %v980, %v1070
  %v1073 = vtanh.pop %v1072
  %v1074 = vsub.f32 1.0, %v1062
  %1076 = vrot.lane.b32.xlu0 %v1073, 96
  %v1077 = vpop.permute.xlu0 %1076
  %v1079 = vmul.f32 %v1074, %v1077
  %v1080 = vmul.f32 %v1062, %v976
  %v1081 = vadd.f32 %v1079, %v1080
  %vm1082 = vcmp.gt.s32.totalorder %v292, 6
  %v1083 = vsel %vm1082, 1, 0
  %1084 = vset.pattern.permute.xlu0 0
  %1085 = vperm.xlu0 %1084, %v1083
  %v1086 = vpop.permute.xlu0 %1085
  %vm1087 = vcmp.eq.s32.totalorder %v1086, 1
  %v1088 = vsel %vm1087, %v1081, %v976
  %s1089 = scalar_lea.vmem [#allocation2], 7
  %v1090 = vld [vmem:[%s1089] ss:$8 sm:$0xf]
  %v1091 = vld [vmem:[%s1089] ss:$8 sm:$0xf0]
  %v1092 = vor.u32 %v1090, %v1091
  %1094 = vrot.lane.b32.xlu0 %v1088, 96
  %v1095 = vpop.permute.xlu0 %1094
  %v1096 = vsel %vm307, %v1095, 0
  %1098 = vmatprep.subr.mxu0 0.0
  %1099 = vmatpush1.msra.mxu0 0.0
  %1100 = vmatprep.subr.mxu0 0.0
  %1101 = vmatpush1.msra.mxu0 0.0
  %1102 = vmatprep.subr.mxu0 0.0
  %1103 = vmatpush1.msra.mxu0 0.0
  %1104 = vmatprep.subr.mxu0 0.0
  %1105 = vmatpush1.msra.mxu0 0.0
  %1106 = vmatprep.subr.mxu0 0.0
  %1107 = vmatpush1.msra.mxu0 0.0
  %1108 = vmatprep.subr.mxu0 0.0
  %1109 = vmatpush1.msra.mxu0 0.0
  %1110 = vmatprep.subr.mxu0 0.0
  %1111 = vmatpush1.msra.mxu0 0.0
  %1112 = vmatprep.subr.mxu0 0.0
  %1113 = vmatpush1.msra.mxu0 0.0
  %1114 = vmatprep.subr.mxu0 0.0
  %1115 = vmatpush1.msra.mxu0 0.0
  %1116 = vmatprep.subr.mxu0 0.0
  %1117 = vmatpush1.msra.mxu0 0.0
  %1118 = vmatprep.subr.mxu0 0.0
  %1119 = vmatpush1.msra.mxu0 0.0
  %1120 = vmatprep.subr.mxu0 0.0
  %1121 = vmatpush1.msra.mxu0 0.0
  %1122 = vmatprep.subr.mxu0 0.0
  %1123 = vmatpush1.msra.mxu0 %v296
  %1124 = vmatprep.subr.mxu0 0.0
  %1125 = vmatpush1.msra.mxu0 %v295
  %1126 = vmatprep.subr.mxu0 0.0
  %1127 = vmatpush1.msra.mxu0 %v294
  %1128 = vmatprep.subr.mxu0 0.0
  %1129 = vmatpush1.msra.mxu0 %v293
  %1130 = vmatprep.subr.mxu0 0.0
  %1131 = vmatpush2.msra.mxu0 0.0
  %1132 = vmatprep.subr.mxu0 0.0
  %1133 = vmatpush2.msra.mxu0 0.0
  %1134 = vmatprep.subr.mxu0 0.0
  %1135 = vmatpush2.msra.mxu0 0.0
  %1136 = vmatprep.subr.mxu0 0.0
  %1137 = vmatpush2.msra.mxu0 0.0
  %1138 = vmatprep.subr.mxu0 0.0
  %1139 = vmatpush2.msra.mxu0 0.0
  %1140 = vmatprep.subr.mxu0 0.0
  %1141 = vmatpush2.msra.mxu0 0.0
  %1142 = vmatprep.subr.mxu0 0.0
  %1143 = vmatpush2.msra.mxu0 0.0
  %1144 = vmatprep.subr.mxu0 0.0
  %1145 = vmatpush2.msra.mxu0 0.0
  %1146 = vmatprep.subr.mxu0 0.0
  %1147 = vmatpush2.msra.mxu0 0.0
  %1148 = vmatprep.subr.mxu0 0.0
  %1149 = vmatpush2.msra.mxu0 0.0
  %1150 = vmatprep.subr.mxu0 0.0
  %1151 = vmatpush2.msra.mxu0 0.0
  %1152 = vmatprep.subr.mxu0 0.0
  %1153 = vmatpush2.msra.mxu0 0.0
  %1154 = vmatprep.subr.mxu0 0.0
  %1155 = vmatpush2.msra.mxu0 0.0
  %1156 = vmatprep.subr.mxu0 0.0
  %1157 = vmatpush2.msra.mxu0 0.0
  %1158 = vmatprep.subr.mxu0 0.0
  %1159 = vmatpush2.msra.mxu0 0.0
  %1160 = vmatprep.subr.mxu0 0.0
  %1161 = vmatpush2.msra.mxu0 0.0
  %1162 = vmatprep.mubr.f32.mxu0 0.0
  %1163 = vmatmul.mubr.f32.gmra.mxu0 %v1096
  %v1164 = vpop.f32.mrf.mxu0
  %v1165 = vadd.f32 %v305, %v1164
  %v1166 = vpop.f32.mrf.mxu0
  %1167 = vdwg.mxu0
  %v1168 = vadd.f32 %v1092, %v1165
  %v1169 = vxor.u32 %v1168, 2147483648
  %v1170 = vmul.f32 %v1169, 1.442695
  %v1171 = vpow.pop %v1170
  %v1172 = vadd.f32 %v1171, 1.0
  %v1173 = vrcp.pop %v1172
  %v1174 = vmul.f32 1.0, %v1173
  %1176 = vrot.lane.b32.xlu0 %v1165, 64
  %v1177 = vpop.permute.xlu0 %1176
  %v1179 = vmul.f32 %v1174, %v1177
  %1181 = vrot.lane.b32.xlu0 %v1179, 64
  %v1182 = vpop.permute.xlu0 %1181
  %v1184 = vadd.f32 %v1092, %v1182
  %v1185 = vtanh.pop %v1184
  %v1186 = vsub.f32 1.0, %v1174
  %1188 = vrot.lane.b32.xlu0 %v1185, 96
  %v1189 = vpop.permute.xlu0 %1188
  %v1191 = vmul.f32 %v1186, %v1189
  %v1192 = vmul.f32 %v1174, %v1088
  %v1193 = vadd.f32 %v1191, %v1192
  %vm1194 = vcmp.gt.s32.totalorder %v292, 7
  %v1195 = vsel %vm1194, 1, 0
  %1196 = vset.pattern.permute.xlu0 0
  %1197 = vperm.xlu0 %1196, %v1195
  %v1198 = vpop.permute.xlu0 %1197
  %vm1199 = vcmp.eq.s32.totalorder %v1198, 1
  %v1200 = vsel %vm1199, %v1193, %v1088
  %v1201 = vld [vmem:[%s9] sm:$0xff]
  %v1202 = vld [vmem:[%s9 + $0x8] sm:$0xff]
  %v1203 = vld [vmem:[%s9 + $0x10] sm:$0xff]
  %v1204 = vld [vmem:[%s9 + $0x18] sm:$0xff]
  %v1205 = vld [vmem:[%s10] sm:$0x1]
  %v1207 = vlaneseq
  %v1208 = vshrl.u32 %v1207, 7
  %v1209 = vsub.s32 0, %v1208
  %v1210 = vrot.slane %v1205, %v1209
  %1213 = vrot.lane.b32.xlu0 %v1200, 96
  %v1214 = vpop.permute.xlu0 %1213
  %v1215 = vsel %vm307, %v1214, 0
  %1217 = vmatprep.subr.mxu0 0.0
  %1218 = vmatpush1.msra.mxu0 0.0
  %1219 = vmatprep.subr.mxu0 0.0
  %1220 = vmatpush1.msra.mxu0 0.0
  %1221 = vmatprep.subr.mxu0 0.0
  %1222 = vmatpush1.msra.mxu0 0.0
  %1223 = vmatprep.subr.mxu0 0.0
  %1224 = vmatpush1.msra.mxu0 0.0
  %1225 = vmatprep.subr.mxu0 0.0
  %1226 = vmatpush1.msra.mxu0 0.0
  %1227 = vmatprep.subr.mxu0 0.0
  %1228 = vmatpush1.msra.mxu0 0.0
  %1229 = vmatprep.subr.mxu0 0.0
  %1230 = vmatpush1.msra.mxu0 0.0
  %1231 = vmatprep.subr.mxu0 0.0
  %1232 = vmatpush1.msra.mxu0 0.0
  %1233 = vmatprep.subr.mxu0 0.0
  %1234 = vmatpush1.msra.mxu0 0.0
  %1235 = vmatprep.subr.mxu0 0.0
  %1236 = vmatpush1.msra.mxu0 0.0
  %1237 = vmatprep.subr.mxu0 0.0
  %1238 = vmatpush1.msra.mxu0 0.0
  %1239 = vmatprep.subr.mxu0 0.0
  %1240 = vmatpush1.msra.mxu0 0.0
  %1241 = vmatprep.subr.mxu0 0.0
  %1242 = vmatpush1.msra.mxu0 %v1204
  %1243 = vmatprep.subr.mxu0 0.0
  %1244 = vmatpush1.msra.mxu0 %v1203
  %1245 = vmatprep.subr.mxu0 0.0
  %1246 = vmatpush1.msra.mxu0 %v1202
  %1247 = vmatprep.subr.mxu0 0.0
  %1248 = vmatpush1.msra.mxu0 %v1201
  %1249 = vmatprep.subr.mxu0 0.0
  %1250 = vmatpush2.msra.mxu0 0.0
  %1251 = vmatprep.subr.mxu0 0.0
  %1252 = vmatpush2.msra.mxu0 0.0
  %1253 = vmatprep.subr.mxu0 0.0
  %1254 = vmatpush2.msra.mxu0 0.0
  %1255 = vmatprep.subr.mxu0 0.0
  %1256 = vmatpush2.msra.mxu0 0.0
  %1257 = vmatprep.subr.mxu0 0.0
  %1258 = vmatpush2.msra.mxu0 0.0
  %1259 = vmatprep.subr.mxu0 0.0
  %1260 = vmatpush2.msra.mxu0 0.0
  %1261 = vmatprep.subr.mxu0 0.0
  %1262 = vmatpush2.msra.mxu0 0.0
  %1263 = vmatprep.subr.mxu0 0.0
  %1264 = vmatpush2.msra.mxu0 0.0
  %1265 = vmatprep.subr.mxu0 0.0
  %1266 = vmatpush2.msra.mxu0 0.0
  %1267 = vmatprep.subr.mxu0 0.0
  %1268 = vmatpush2.msra.mxu0 0.0
  %1269 = vmatprep.subr.mxu0 0.0
  %1270 = vmatpush2.msra.mxu0 0.0
  %1271 = vmatprep.subr.mxu0 0.0
  %1272 = vmatpush2.msra.mxu0 0.0
  %1273 = vmatprep.subr.mxu0 0.0
  %1274 = vmatpush2.msra.mxu0 0.0
  %1275 = vmatprep.subr.mxu0 0.0
  %1276 = vmatpush2.msra.mxu0 0.0
  %1277 = vmatprep.subr.mxu0 0.0
  %1278 = vmatpush2.msra.mxu0 0.0
  %1279 = vmatprep.subr.mxu0 0.0
  %1280 = vmatpush2.msra.mxu0 0.0
  %1281 = vmatprep.mubr.f32.mxu0 0.0
  %1282 = vmatmul.mubr.f32.gmra.mxu0 %v1215
  %v1283 = vpop.f32.mrf.mxu0
  %v1284 = vadd.f32 %v1210, %v1283
  %v1285 = vpop.f32.mrf.mxu0
  %1286 = vdwg.mxu0
  %vm1287 = vcmp.gt.f32.partialorder %v1284, 0.0
  %v1288 = vmin.f32 %v1284, 0.0
  %v1289 = vmul.f32 %v1288, 1.442695
  %v1290 = vpow.pop %v1289
  %v1291 = vsub.f32 %v1290, 1.0
  %v1292 = vmul.f32 %v1291, 1.6732632
  %v1293 = vsel %vm1287, %v1284, %v1292
  %v1294 = vmul.f32 %v1293, 1.050701
  %v1295 = vld [vmem:[%s11] sm:$0xff]
  %v1296 = vld [vmem:[%s11 + $0x8] sm:$0xff]
  %v1297 = vld [vmem:[#allocation3] sm:$0x1]
  %v1299 = vlaneseq
  %v1300 = vshrl.u32 %v1299, 7
  %v1301 = vsub.s32 0, %v1300
  %v1302 = vrot.slane %v1297, %v1301
  %vm1304 = vcmask 130048
  %v1306 = vsel %vm1304, %v1294, 0
  %1308 = vmatprep.subr.mxu0 0.0
  %1309 = vmatpush1.msra.mxu0 0.0
  %1310 = vmatprep.subr.mxu0 0.0
  %1311 = vmatpush1.msra.mxu0 0.0
  %1312 = vmatprep.subr.mxu0 0.0
  %1313 = vmatpush1.msra.mxu0 0.0
  %1314 = vmatprep.subr.mxu0 0.0
  %1315 = vmatpush1.msra.mxu0 0.0
  %1316 = vmatprep.subr.mxu0 0.0
  %1317 = vmatpush1.msra.mxu0 0.0
  %1318 = vmatprep.subr.mxu0 0.0
  %1319 = vmatpush1.msra.mxu0 0.0
  %1320 = vmatprep.subr.mxu0 0.0
  %1321 = vmatpush1.msra.mxu0 0.0
  %1322 = vmatprep.subr.mxu0 0.0
  %1323 = vmatpush1.msra.mxu0 0.0
  %1324 = vmatprep.subr.mxu0 0.0
  %1325 = vmatpush1.msra.mxu0 0.0
  %1326 = vmatprep.subr.mxu0 0.0
  %1327 = vmatpush1.msra.mxu0 0.0
  %1328 = vmatprep.subr.mxu0 0.0
  %1329 = vmatpush1.msra.mxu0 0.0
  %1330 = vmatprep.subr.mxu0 0.0
  %1331 = vmatpush1.msra.mxu0 0.0
  %1332 = vmatprep.subr.mxu0 0.0
  %1333 = vmatpush1.msra.mxu0 0.0
  %1334 = vmatprep.subr.mxu0 0.0
  %1335 = vmatpush1.msra.mxu0 0.0
  %1336 = vmatprep.subr.mxu0 0.0
  %1337 = vmatpush1.msra.mxu0 %v1296
  %1338 = vmatprep.subr.mxu0 0.0
  %1339 = vmatpush1.msra.mxu0 %v1295
  %1340 = vmatprep.subr.mxu0 0.0
  %1341 = vmatpush2.msra.mxu0 0.0
  %1342 = vmatprep.subr.mxu0 0.0
  %1343 = vmatpush2.msra.mxu0 0.0
  %1344 = vmatprep.subr.mxu0 0.0
  %1345 = vmatpush2.msra.mxu0 0.0
  %1346 = vmatprep.subr.mxu0 0.0
  %1347 = vmatpush2.msra.mxu0 0.0
  %1348 = vmatprep.subr.mxu0 0.0
  %1349 = vmatpush2.msra.mxu0 0.0
  %1350 = vmatprep.subr.mxu0 0.0
  %1351 = vmatpush2.msra.mxu0 0.0
  %1352 = vmatprep.subr.mxu0 0.0
  %1353 = vmatpush2.msra.mxu0 0.0
  %1354 = vmatprep.subr.mxu0 0.0
  %1355 = vmatpush2.msra.mxu0 0.0
  %1356 = vmatprep.subr.mxu0 0.0
  %1357 = vmatpush2.msra.mxu0 0.0
  %1358 = vmatprep.subr.mxu0 0.0
  %1359 = vmatpush2.msra.mxu0 0.0
  %1360 = vmatprep.subr.mxu0 0.0
  %1361 = vmatpush2.msra.mxu0 0.0
  %1362 = vmatprep.subr.mxu0 0.0
  %1363 = vmatpush2.msra.mxu0 0.0
  %1364 = vmatprep.subr.mxu0 0.0
  %1365 = vmatpush2.msra.mxu0 0.0
  %1366 = vmatprep.subr.mxu0 0.0
  %1367 = vmatpush2.msra.mxu0 0.0
  %1368 = vmatprep.subr.mxu0 0.0
  %1369 = vmatpush2.msra.mxu0 0.0
  %1370 = vmatprep.subr.mxu0 0.0
  %1371 = vmatpush2.msra.mxu0 0.0
  %1372 = vmatprep.mubr.f32.mxu0 0.0
  %1373 = vmatmul.mubr.f32.gmra.mxu0 %v1306
  %v1374 = vpop.f32.mrf.mxu0
  %v1375 = vadd.f32 %v1302, %v1374
  %v1376 = vpop.f32.mrf.mxu0
  %1377 = vdwg.mxu0
  %vm1378 = vcmp.gt.f32.partialorder %v1375, 0.0
  %v1379 = vmin.f32 %v1375, 0.0
  %v1380 = vmul.f32 %v1379, 1.442695
  %v1381 = vpow.pop %v1380
  %v1382 = vsub.f32 %v1381, 1.0
  %v1383 = vmul.f32 %v1382, 1.6732632
  %v1384 = vsel %vm1378, %v1375, %v1383
  %v1385 = vmul.f32 %v1384, 1.050701
  %vm1386 = vcmask 7168
  %1387 = vst.msk [vmem:[%s13] sm:$0xff] %vm1386, %v1385
  // Predicated region
  $region54: #{point_seq_hazard_forward.1} parent=0 // pred_check
    _
  $region55: #{point_seq_hazard_forward.1} parent=0 // pred_check_branch
    %1389 = sbr.rel (0) target = $region57
  $region56: #{point_seq_hazard_forward.1} parent=0 // pred_region
    _
  $region57: #{point_seq_hazard_forward.1} parent=0 // pred_fallthru
    _
  // Predicated region
  $region58: #{point_seq_hazard_forward.1} parent=0 // pred_check
    _
  $region59: #{point_seq_hazard_forward.1} parent=0 // pred_check_branch
    %1391 = sbr.rel (0) target = $region61
  $region60: #{point_seq_hazard_forward.1} parent=0 // pred_region
    _
  $region61: #{point_seq_hazard_forward.1} parent=0 // pred_fallthru
    _

</llo_original>
